<compile_context>
chip_gen: v5e
topology: v5e:2x2
jax: 0.10.0
libtpu: 0.0.40
codegen_flags: <defaults>
</compile_context>

<pallas_src>
import jax
import jax.numpy as jnp
from jax import lax
from jax.experimental import pallas as pl
from jax.experimental.pallas import tpu as pltpu  # noqa: F401  (kept for TPU-specific tweaks)

# ---- model hyper-parameters (small, consistent with CEBlock.__init__) ----
DIM = 32                      # dim
NUM_HEADS = 4                 # num_heads
HEAD_DIM = DIM // NUM_HEADS
SEQ = 8                       # N = L_template + L_search
MLP_HIDDEN = int(DIM * 4.0)   # mlp_ratio=4.0
ADPT_HIDDEN = int(DIM * 0.25) # Adapter mlp_ratio=0.25
CAT_HIDDEN = MLP_HIDDEN + ADPT_HIDDEN      # 136 (Mlp hidden || adapter hidden)
PO_W = DIM + ADPT_HIDDEN                   # 40  (proj out || adapter-down out)
BIAS_W = CAT_HIDDEN                        # widest bias row (136)
SLAB_W_COLS = 3 * DIM + PO_W + CAT_HIDDEN  # 272
OUT_W = 128                                # lane-dense packed output width
BLOCK_SCALE = 0.5             # CEBlock.scale (adapter mixing weight)
ATTN_SCALE = HEAD_DIM ** -0.5 # timm Attention scale
LN_EPS = 1e-5                 # nn.LayerNorm default eps


def _erf(x):
    # Abramowitz & Stegun 7.1.26, max abs error ~1.5e-7 — well inside the
    # 1e-4 tolerance vs PyTorch's exact erf-based GELU.
    a1, a2, a3, a4, a5 = 0.254829592, -0.284496736, 1.421413741, -1.453152027, 1.061405429
    p = 0.3275911
    ax = jnp.abs(x)
    t = 1.0 / (1.0 + p * ax)
    poly = ((((a5 * t + a4) * t + a3) * t + a2) * t + a1) * t
    y = 1.0 - poly * jnp.exp(-ax * ax)
    return jnp.where(x >= 0, y, -y)


def _gelu(x):
    # exact GELU (PyTorch nn.GELU default, erf-based)
    return 0.5 * x * (1.0 + _erf(x * (1.0 / jnp.sqrt(2.0))))


def _layernorm(x, g, b):
    mu = jnp.mean(x, axis=-1, keepdims=True)
    var = jnp.mean((x - mu) ** 2, axis=-1, keepdims=True)
    return (x - mu) * lax.rsqrt(var + LN_EPS) * g + b


def _ce_block_kernel(x_ref, wslab_ref, bslab_ref, w2slab_ref, out_ref):
    x = x_ref[...]                      # (B*N, C), whole batch, single invocation
    bn = x.shape[0]
    nb = bn // SEQ                      # static batch count

    W = wslab_ref[...]                  # (C, 272)  [wqkv | wproj_fused | w1||wm1]
    Bv = bslab_ref[...]                 # (8, 136)  bias/LN rows
    W2 = w2slab_ref[...]                # (144, C)  [w2 ; 0.5*wm2 ; ws2]

    ln1_g = Bv[0:1, :DIM]
    ln1_b = Bv[1:2, :DIM]
    ln2_g = Bv[2:3, :DIM]
    ln2_b = Bv[3:4, :DIM]
    b_po  = Bv[4:5, :PO_W]              # [bproj | bproj@ws1 + bs1]
    bs2   = Bv[5:6, :DIM]
    b_cat = Bv[6:7, :CAT_HIDDEN]        # [b1 | bm1]
    b2_cat = Bv[7:8, :DIM]              # b2 + 0.5*bm2

    # ---- norm1 + qkv (one MXU push over all B*N rows) ----
    xn = _layernorm(x, ln1_g, ln1_b)
    qkv = jnp.dot(xn, W[:, 0:3 * DIM], preferred_element_type=jnp.float32)   # (BN, 3C)
    q = qkv[:, 0:DIM]
    k = qkv[:, DIM:2 * DIM]
    v = qkv[:, 2 * DIM:3 * DIM]

    # ---- per-batch (SEQ-aligned slices), per-head attention: O(B), no batch mask ----
    o_rows, p_rows = [], []
    for b in range(nb):                                   # static unroll over batch
        sl = slice(b * SEQ, (b + 1) * SEQ)
        qb, kb, vb = q[sl, :], k[sl, :], v[sl, :]         # (8, C) each, sublane-aligned
        oh, ph = [], []
        for h in range(NUM_HEADS):                        # static unroll over heads
            hs = slice(h * HEAD_DIM, (h + 1) * HEAD_DIM)
            s = lax.dot_general(qb[:, hs], kb[:, hs], (((1,), (1,)), ((), ())),
                                preferred_element_type=jnp.float32) * ATTN_SCALE
            s = s - jnp.max(s, axis=-1, keepdims=True)
            e = jnp.exp(s)
            p = e / jnp.sum(e, axis=-1, keepdims=True)    # exact softmax (attn_drop=0)
            ph.append(p)
            oh.append(jnp.dot(p, vb[:, hs], preferred_element_type=jnp.float32))
        o_rows.append(jnp.concatenate(oh, axis=-1))       # (SEQ, C)
        p_rows.append(jnp.concatenate(ph, axis=-1))       # (SEQ, H*SEQ)
    o_all = jnp.concatenate(o_rows, axis=0)               # (BN, C)
    attn_all = jnp.concatenate(p_rows, axis=0)            # (BN, H*SEQ)

    # ---- fused output projection + space-adapter down-projection (exact) ----
    o_cat = jnp.dot(o_all, W[:, 3 * DIM:3 * DIM + PO_W],
                    preferred_element_type=jnp.float32) + b_po          # (BN, 40)
    x_attn = o_cat[:, :DIM]                                             # proj output
    a_hid = _gelu(o_cat[:, DIM:PO_W])                                   # adapter hidden
    x_attn = x_attn + jnp.dot(a_hid, W2[CAT_HIDDEN:CAT_HIDDEN + ADPT_HIDDEN, :],
                              preferred_element_type=jnp.float32) + bs2 # skip_connect=True

    # ---- residual (drop_path = Identity) ----
    x = x + x_attn

    # ---- norm2 + fused (Mlp || MLP adapter): one up-proj, one down-proj ----
    xn2 = _layernorm(x, ln2_g, ln2_b)
    hcat = _gelu(jnp.dot(xn2, W[:, 3 * DIM + PO_W:],
                         preferred_element_type=jnp.float32) + b_cat)   # (BN, 136)
    xout = x + jnp.dot(hcat, W2[:CAT_HIDDEN, :],
                       preferred_element_type=jnp.float32) + b2_cat     # (BN, C)

    # ---- single lane-dense (128-lane) store: [xout | attn | zero pad] ----
    pad = jnp.zeros((bn, OUT_W - DIM - NUM_HEADS * SEQ), jnp.float32)
    out_ref[...] = jnp.concatenate([xout, attn_all, pad], axis=-1)


def prepare_params(params):
    """One-time weight fusion + packing into 3 lane-dense slabs (hoisted out of
    the per-call path)."""
    wproj, bproj = params['wproj'], params['bproj']
    ws1, bs1 = params['ws1'], params['bs1']

    # fold space-adapter down-projection into the output projection (exact)
    w_po = jnp.concatenate([wproj, wproj @ ws1], axis=1)                 # (C, 40)
    b_po = jnp.concatenate([bproj, bproj @ ws1 + bs1], axis=1)           # (1, 40)

    # fuse the two FFN-branch first matmuls (shared LHS xn2)
    w_cat = jnp.concatenate([params['w1'], params['wm1']], axis=1)       # (C, 136)
    b_cat = jnp.concatenate([params['b1'], params['bm1']], axis=1)       # (1, 136)

    # fuse the two FFN-branch second matmuls with the adapter mixing scale (exact)
    w2_cat = jnp.concatenate([params['w2'], BLOCK_SCALE * params['wm2']], axis=0)  # (136, C)
    b2_cat = params['b2'] + BLOCK_SCALE * params['bm2']                             # (1, C)

    slab_w = jnp.concatenate([params['wqkv'], w_po, w_cat], axis=1)      # (C, 272)

    def _row(v):
        v = v.reshape(-1)
        return jnp.pad(v, (0, BIAS_W - v.shape[0]))

    slab_b = jnp.stack([
        _row(params['ln1_g']), _row(params['ln1_b']),
        _row(params['ln2_g']), _row(params['ln2_b']),
        _row(b_po), _row(params['bs2']), _row(b_cat), _row(b2_cat)], axis=0)  # (8, 136)

    slab_w2 = jnp.concatenate([w2_cat, params['ws2']], axis=0)           # (144, C)

    return {'slab_w': slab_w, 'slab_b': slab_b, 'slab_w2': slab_w2}


def ce_block_forward(x, global_index_template, global_index_search, packed,
                     mask=None, ce_template_mask=None, keep_ratio_search=None,
                     path='x', sub_mode='dte'):
    """Mirrors CEBlock.forward (sub_mode='dte', keep_ratio_search=1.0).

    `packed` is the output of prepare_params(params) (one-time prep)."""
    B, N, C = x.shape
    assert (N, C) == (SEQ, DIM)
    bn = B * N

    x_flat = x.reshape(bn, C)

    # single kernel invocation (no grid): whole working set is <1 MiB of VMEM,
    # and per-grid-step overhead would dominate at these shapes.
    out = pl.pallas_call(
        _ce_block_kernel,
        out_shape=jax.ShapeDtypeStruct((bn, OUT_W), jnp.float32),
    )(x_flat, packed['slab_w'], packed['slab_b'], packed['slab_w2'])

    x_new = out[:, :DIM].reshape(B, N, C)

    # attention packed per-batch as (BN, H*N): pure reshape/transpose to unpack
    attn = out[:, DIM:DIM + NUM_HEADS * SEQ].reshape(B, N, NUM_HEADS, N)
    attn = jnp.transpose(attn, (0, 2, 1, 3))                  # (B, H, N, N)

    # keep_ratio_search == 1.0 (module default) -> candidate elimination skipped.
    removed_index_search = None
    return x_new, global_index_template, global_index_search, removed_index_search, attn


def init_params(key):
    ks = jax.random.split(key, 8)

    def lin(k, din, dout):
        kw, kb = jax.random.split(k)
        return (jax.random.normal(kw, (din, dout), jnp.float32) * 0.02,
                jax.random.normal(kb, (1, dout), jnp.float32) * 0.02)

    p = {}
    p['ln1_g'] = jnp.ones((1, DIM), jnp.float32)
    p['ln1_b'] = jnp.zeros((1, DIM), jnp.float32)
    p['wqkv'] = jax.random.normal(ks[0], (DIM, 3 * DIM), jnp.float32) * 0.02  # qkv_bias=False
    p['wproj'], p['bproj'] = lin(ks[1], DIM, DIM)
    p['ln2_g'] = jnp.ones((1, DIM), jnp.float32)
    p['ln2_b'] = jnp.zeros((1, DIM), jnp.float32)
    p['w1'], p['b1'] = lin(ks[2], DIM, MLP_HIDDEN)
    p['w2'], p['b2'] = lin(ks[3], MLP_HIDDEN, DIM)
    p['ws1'], p['bs1'] = lin(ks[4], DIM, ADPT_HIDDEN)   # Space_X_DTE_Adapter
    p['ws2'], p['bs2'] = lin(ks[5], ADPT_HIDDEN, DIM)
    p['wm1'], p['bm1'] = lin(ks[6], DIM, ADPT_HIDDEN)   # MLP_X_DTE_Adapter
    p['wm2'], p['bm2'] = lin(ks[7], ADPT_HIDDEN, DIM)
    return p


def ref_forward(x, params):
    """Plain-JAX reference reproducing the PyTorch forward math."""
    def layernorm(x, g, b):
        mu = x.mean(-1, keepdims=True)
        var = ((x - mu) ** 2).mean(-1, keepdims=True)
        return (x - mu) / jnp.sqrt(var + LN_EPS) * g[0] + b[0]

    def gelu(x):
        return 0.5 * x * (1.0 + jax.scipy.special.erf(x / jnp.sqrt(2.0)))

    B, N, C = x.shape
    xn = layernorm(x, params['ln1_g'], params['ln1_b'])
    qkv = (xn @ params['wqkv']).reshape(B, N, 3, NUM_HEADS, HEAD_DIM).transpose(2, 0, 3, 1, 4)
    q, k, v = qkv[0], qkv[1], qkv[2]
    attn = jnp.einsum('bhnd,bhmd->bhnm', q, k) * ATTN_SCALE
    attn = jax.nn.softmax(attn, axis=-1)
    out = jnp.einsum('bhnm,bhmd->bhnd', attn, v).transpose(0, 2, 1, 3).reshape(B, N, C)
    x_attn = out @ params['wproj'] + params['bproj'][0]
    a = gelu(x_attn @ params['ws1'] + params['bs1'][0]) @ params['ws2'] + params['bs2'][0]
    x_attn = x_attn + a
    x = x + x_attn
    xn2 = layernorm(x, params['ln2_g'], params['ln2_b'])
    m = gelu(xn2 @ params['w1'] + params['b1'][0]) @ params['w2'] + params['b2'][0]
    am = gelu(xn2 @ params['wm1'] + params['bm1'][0]) @ params['wm2'] + params['bm2'][0]
    x = x + m + BLOCK_SCALE * am
    return x, attn


if __name__ == "__main__":
    key = jax.random.PRNGKey(0)
    kx, kp = jax.random.split(key)
    B = 2
    lens_t = 4
    x = jax.random.normal(kx, (B, SEQ, DIM), jnp.float32)
    params = init_params(kp)
    packed = prepare_params(params)   # one-time weight fusion + packing

    # global indices (dict-of-arrays, as the module expects), passed through.
    git = {'xdte': jnp.tile(jnp.arange(lens_t, dtype=jnp.int32)[None], (B, 1))}
    gis = {'xdte': jnp.tile(jnp.arange(SEQ - lens_t, dtype=jnp.int32)[None], (B, 1))}

    x_new, git_out, gis_out, removed, attn = ce_block_forward(
        x, git, gis, packed, mask=None, ce_template_mask=None,
        keep_ratio_search=None, path='x', sub_mode='dte')
    jax.block_until_ready((x_new, attn))

    x_ref, attn_ref = ref_forward(x, params)
    assert jnp.allclose(attn, attn_ref, atol=1e-5, rtol=1e-5), \
        float(jnp.abs(attn - attn_ref).max())
    assert jnp.allclose(x_new, x_ref, atol=1e-4, rtol=1e-4), \
        float(jnp.abs(x_new - x_ref).max())
    print("KERNEL_OK")
</pallas_src>

<mosaic_0001>
module attributes {stable_mosaic.version = 11 : i64} {
  func.func @_ce_block_kernel(%arg0: memref<16x32xf32, #tpu.memory_space<vmem>>, %arg1: memref<32x272xf32, #tpu.memory_space<vmem>>, %arg2: memref<8x136xf32, #tpu.memory_space<vmem>>, %arg3: memref<144x32xf32, #tpu.memory_space<vmem>>, %arg4: memref<16x128xf32, #tpu.memory_space<vmem>>) attributes {dimension_semantics = [], scalar_prefetch = 0 : i64, scratch_operands = 0 : i64, tpu.core_type = #tpu.core_type<tc>} {
    %c0 = arith.constant 0 : index
    %c0_0 = arith.constant 0 : index
    %0 = vector.load %arg0[%c0, %c0_0] : memref<16x32xf32, #tpu.memory_space<vmem>>, vector<16x32xf32>
    %c0_1 = arith.constant 0 : index
    %c0_2 = arith.constant 0 : index
    %1 = vector.load %arg1[%c0_1, %c0_2] : memref<32x272xf32, #tpu.memory_space<vmem>>, vector<32x272xf32>
    %c0_3 = arith.constant 0 : index
    %c0_4 = arith.constant 0 : index
    %2 = vector.load %arg2[%c0_3, %c0_4] : memref<8x136xf32, #tpu.memory_space<vmem>>, vector<8x136xf32>
    %c0_5 = arith.constant 0 : index
    %c0_6 = arith.constant 0 : index
    %3 = vector.load %arg3[%c0_5, %c0_6] : memref<144x32xf32, #tpu.memory_space<vmem>>, vector<144x32xf32>
    %4 = vector.extract_strided_slice %2 {offsets = [0, 0], sizes = [1, 32], strides = [1, 1]} : vector<8x136xf32> to vector<1x32xf32>
    %5 = vector.extract_strided_slice %2 {offsets = [1, 0], sizes = [1, 32], strides = [1, 1]} : vector<8x136xf32> to vector<1x32xf32>
    %6 = vector.extract_strided_slice %2 {offsets = [2, 0], sizes = [1, 32], strides = [1, 1]} : vector<8x136xf32> to vector<1x32xf32>
    %7 = vector.extract_strided_slice %2 {offsets = [3, 0], sizes = [1, 32], strides = [1, 1]} : vector<8x136xf32> to vector<1x32xf32>
    %8 = vector.extract_strided_slice %2 {offsets = [4, 0], sizes = [1, 40], strides = [1, 1]} : vector<8x136xf32> to vector<1x40xf32>
    %9 = vector.extract_strided_slice %2 {offsets = [5, 0], sizes = [1, 32], strides = [1, 1]} : vector<8x136xf32> to vector<1x32xf32>
    %10 = vector.extract_strided_slice %2 {offsets = [6, 0], sizes = [1, 136], strides = [1, 1]} : vector<8x136xf32> to vector<1x136xf32>
    %11 = vector.extract_strided_slice %2 {offsets = [7, 0], sizes = [1, 32], strides = [1, 1]} : vector<8x136xf32> to vector<1x32xf32>
    %cst = arith.constant dense<0.000000e+00> : vector<16xf32>
    %12 = vector.multi_reduction <add>, %0, %cst [1] : vector<16x32xf32> to vector<16xf32>
    %13 = vector.shape_cast %12 : vector<16xf32> to vector<16x1xf32>
    %cst_7 = arith.constant 3.200000e+01 : f32
    %14 = vector.broadcast %cst_7 : f32 to vector<16x1xf32>
    %15 = arith.divf %13, %14 : vector<16x1xf32>
    %16 = vector.broadcast %15 : vector<16x1xf32> to vector<16x32xf32>
    %17 = arith.subf %0, %16 : vector<16x32xf32>
    %18 = arith.mulf %17, %17 : vector<16x32xf32>
    %cst_8 = arith.constant dense<0.000000e+00> : vector<16xf32>
    %19 = vector.multi_reduction <add>, %18, %cst_8 [1] : vector<16x32xf32> to vector<16xf32>
    %20 = vector.shape_cast %19 : vector<16xf32> to vector<16x1xf32>
    %cst_9 = arith.constant 3.200000e+01 : f32
    %21 = vector.broadcast %cst_9 : f32 to vector<16x1xf32>
    %22 = arith.divf %20, %21 : vector<16x1xf32>
    %23 = vector.broadcast %15 : vector<16x1xf32> to vector<16x32xf32>
    %24 = arith.subf %0, %23 : vector<16x32xf32>
    %cst_10 = arith.constant 9.99999974E-6 : f32
    %25 = vector.broadcast %cst_10 : f32 to vector<16x1xf32>
    %26 = arith.addf %22, %25 : vector<16x1xf32>
    %27 = math.rsqrt %26 : vector<16x1xf32>
    %28 = vector.broadcast %27 : vector<16x1xf32> to vector<16x32xf32>
    %29 = arith.mulf %24, %28 : vector<16x32xf32>
    %30 = vector.broadcast %4 : vector<1x32xf32> to vector<16x32xf32>
    %31 = arith.mulf %29, %30 : vector<16x32xf32>
    %32 = vector.broadcast %5 : vector<1x32xf32> to vector<16x32xf32>
    %33 = arith.addf %31, %32 : vector<16x32xf32>
    %34 = vector.extract_strided_slice %1 {offsets = [0, 0], sizes = [32, 96], strides = [1, 1]} : vector<32x272xf32> to vector<32x96xf32>
    %cst_11 = arith.constant dense<0.000000e+00> : vector<16x96xf32>
    %35 = tpu.matmul %33, %34, %cst_11 {dimension_numbers = #tpu.dot_dimension_numbers<[1], [0], [0], [1], [0, 0, 1, 1], [], []>} : vector<16x32xf32>, vector<32x96xf32>, vector<16x96xf32> -> vector<16x96xf32>
    %36 = vector.extract_strided_slice %35 {offsets = [0, 0], sizes = [16, 32], strides = [1, 1]} : vector<16x96xf32> to vector<16x32xf32>
    %37 = vector.extract_strided_slice %35 {offsets = [0, 32], sizes = [16, 32], strides = [1, 1]} : vector<16x96xf32> to vector<16x32xf32>
    %38 = vector.extract_strided_slice %35 {offsets = [0, 64], sizes = [16, 32], strides = [1, 1]} : vector<16x96xf32> to vector<16x32xf32>
    %39 = vector.extract_strided_slice %36 {offsets = [0, 0], sizes = [8, 32], strides = [1, 1]} : vector<16x32xf32> to vector<8x32xf32>
    %40 = vector.extract_strided_slice %37 {offsets = [0, 0], sizes = [8, 32], strides = [1, 1]} : vector<16x32xf32> to vector<8x32xf32>
    %41 = vector.extract_strided_slice %38 {offsets = [0, 0], sizes = [8, 32], strides = [1, 1]} : vector<16x32xf32> to vector<8x32xf32>
    %42 = vector.extract_strided_slice %39 {offsets = [0, 0], sizes = [8, 8], strides = [1, 1]} : vector<8x32xf32> to vector<8x8xf32>
    %43 = vector.extract_strided_slice %40 {offsets = [0, 0], sizes = [8, 8], strides = [1, 1]} : vector<8x32xf32> to vector<8x8xf32>
    %cst_12 = arith.constant dense<0.000000e+00> : vector<8x8xf32>
    %44 = tpu.matmul %42, %43, %cst_12 {dimension_numbers = #tpu.dot_dimension_numbers<[1], [1], [0], [0], [0, 0, 1, 0], [], []>} : vector<8x8xf32>, vector<8x8xf32>, vector<8x8xf32> -> vector<8x8xf32>
    %cst_13 = arith.constant 0.353553385 : f32
    %45 = vector.broadcast %cst_13 : f32 to vector<8x8xf32>
    %46 = arith.mulf %44, %45 : vector<8x8xf32>
    %cst_14 = arith.constant dense<0xFF800000> : vector<8xf32>
    %47 = vector.multi_reduction <maximumf>, %46, %cst_14 [1] : vector<8x8xf32> to vector<8xf32>
    %48 = vector.shape_cast %47 : vector<8xf32> to vector<8x1xf32>
    %49 = vector.broadcast %48 : vector<8x1xf32> to vector<8x8xf32>
    %50 = arith.subf %46, %49 : vector<8x8xf32>
    %51 = math.exp %50 : vector<8x8xf32>
    %cst_15 = arith.constant dense<0.000000e+00> : vector<8xf32>
    %52 = vector.multi_reduction <add>, %51, %cst_15 [1] : vector<8x8xf32> to vector<8xf32>
    %53 = vector.shape_cast %52 : vector<8xf32> to vector<8x1xf32>
    %54 = vector.broadcast %53 : vector<8x1xf32> to vector<8x8xf32>
    %55 = arith.divf %51, %54 : vector<8x8xf32>
    %56 = vector.extract_strided_slice %41 {offsets = [0, 0], sizes = [8, 8], strides = [1, 1]} : vector<8x32xf32> to vector<8x8xf32>
    %cst_16 = arith.constant dense<0.000000e+00> : vector<8x8xf32>
    %57 = tpu.matmul %55, %56, %cst_16 {dimension_numbers = #tpu.dot_dimension_numbers<[1], [0], [0], [1], [0, 0, 1, 1], [], []>} : vector<8x8xf32>, vector<8x8xf32>, vector<8x8xf32> -> vector<8x8xf32>
    %58 = vector.extract_strided_slice %39 {offsets = [0, 8], sizes = [8, 8], strides = [1, 1]} : vector<8x32xf32> to vector<8x8xf32>
    %59 = vector.extract_strided_slice %40 {offsets = [0, 8], sizes = [8, 8], strides = [1, 1]} : vector<8x32xf32> to vector<8x8xf32>
    %cst_17 = arith.constant dense<0.000000e+00> : vector<8x8xf32>
    %60 = tpu.matmul %58, %59, %cst_17 {dimension_numbers = #tpu.dot_dimension_numbers<[1], [1], [0], [0], [0, 0, 1, 0], [], []>} : vector<8x8xf32>, vector<8x8xf32>, vector<8x8xf32> -> vector<8x8xf32>
    %cst_18 = arith.constant 0.353553385 : f32
    %61 = vector.broadcast %cst_18 : f32 to vector<8x8xf32>
    %62 = arith.mulf %60, %61 : vector<8x8xf32>
    %cst_19 = arith.constant dense<0xFF800000> : vector<8xf32>
    %63 = vector.multi_reduction <maximumf>, %62, %cst_19 [1] : vector<8x8xf32> to vector<8xf32>
    %64 = vector.shape_cast %63 : vector<8xf32> to vector<8x1xf32>
    %65 = vector.broadcast %64 : vector<8x1xf32> to vector<8x8xf32>
    %66 = arith.subf %62, %65 : vector<8x8xf32>
    %67 = math.exp %66 : vector<8x8xf32>
    %cst_20 = arith.constant dense<0.000000e+00> : vector<8xf32>
    %68 = vector.multi_reduction <add>, %67, %cst_20 [1] : vector<8x8xf32> to vector<8xf32>
    %69 = vector.shape_cast %68 : vector<8xf32> to vector<8x1xf32>
    %70 = vector.broadcast %69 : vector<8x1xf32> to vector<8x8xf32>
    %71 = arith.divf %67, %70 : vector<8x8xf32>
    %72 = vector.extract_strided_slice %41 {offsets = [0, 8], sizes = [8, 8], strides = [1, 1]} : vector<8x32xf32> to vector<8x8xf32>
    %cst_21 = arith.constant dense<0.000000e+00> : vector<8x8xf32>
    %73 = tpu.matmul %71, %72, %cst_21 {dimension_numbers = #tpu.dot_dimension_numbers<[1], [0], [0], [1], [0, 0, 1, 1], [], []>} : vector<8x8xf32>, vector<8x8xf32>, vector<8x8xf32> -> vector<8x8xf32>
    %74 = vector.extract_strided_slice %39 {offsets = [0, 16], sizes = [8, 8], strides = [1, 1]} : vector<8x32xf32> to vector<8x8xf32>
    %75 = vector.extract_strided_slice %40 {offsets = [0, 16], sizes = [8, 8], strides = [1, 1]} : vector<8x32xf32> to vector<8x8xf32>
    %cst_22 = arith.constant dense<0.000000e+00> : vector<8x8xf32>
    %76 = tpu.matmul %74, %75, %cst_22 {dimension_numbers = #tpu.dot_dimension_numbers<[1], [1], [0], [0], [0, 0, 1, 0], [], []>} : vector<8x8xf32>, vector<8x8xf32>, vector<8x8xf32> -> vector<8x8xf32>
    %cst_23 = arith.constant 0.353553385 : f32
    %77 = vector.broadcast %cst_23 : f32 to vector<8x8xf32>
    %78 = arith.mulf %76, %77 : vector<8x8xf32>
    %cst_24 = arith.constant dense<0xFF800000> : vector<8xf32>
    %79 = vector.multi_reduction <maximumf>, %78, %cst_24 [1] : vector<8x8xf32> to vector<8xf32>
    %80 = vector.shape_cast %79 : vector<8xf32> to vector<8x1xf32>
    %81 = vector.broadcast %80 : vector<8x1xf32> to vector<8x8xf32>
    %82 = arith.subf %78, %81 : vector<8x8xf32>
    %83 = math.exp %82 : vector<8x8xf32>
    %cst_25 = arith.constant dense<0.000000e+00> : vector<8xf32>
    %84 = vector.multi_reduction <add>, %83, %cst_25 [1] : vector<8x8xf32> to vector<8xf32>
    %85 = vector.shape_cast %84 : vector<8xf32> to vector<8x1xf32>
    %86 = vector.broadcast %85 : vector<8x1xf32> to vector<8x8xf32>
    %87 = arith.divf %83, %86 : vector<8x8xf32>
    %88 = vector.extract_strided_slice %41 {offsets = [0, 16], sizes = [8, 8], strides = [1, 1]} : vector<8x32xf32> to vector<8x8xf32>
    %cst_26 = arith.constant dense<0.000000e+00> : vector<8x8xf32>
    %89 = tpu.matmul %87, %88, %cst_26 {dimension_numbers = #tpu.dot_dimension_numbers<[1], [0], [0], [1], [0, 0, 1, 1], [], []>} : vector<8x8xf32>, vector<8x8xf32>, vector<8x8xf32> -> vector<8x8xf32>
    %90 = vector.extract_strided_slice %39 {offsets = [0, 24], sizes = [8, 8], strides = [1, 1]} : vector<8x32xf32> to vector<8x8xf32>
    %91 = vector.extract_strided_slice %40 {offsets = [0, 24], sizes = [8, 8], strides = [1, 1]} : vector<8x32xf32> to vector<8x8xf32>
    %cst_27 = arith.constant dense<0.000000e+00> : vector<8x8xf32>
    %92 = tpu.matmul %90, %91, %cst_27 {dimension_numbers = #tpu.dot_dimension_numbers<[1], [1], [0], [0], [0, 0, 1, 0], [], []>} : vector<8x8xf32>, vector<8x8xf32>, vector<8x8xf32> -> vector<8x8xf32>
    %cst_28 = arith.constant 0.353553385 : f32
    %93 = vector.broadcast %cst_28 : f32 to vector<8x8xf32>
    %94 = arith.mulf %92, %93 : vector<8x8xf32>
    %cst_29 = arith.constant dense<0xFF800000> : vector<8xf32>
    %95 = vector.multi_reduction <maximumf>, %94, %cst_29 [1] : vector<8x8xf32> to vector<8xf32>
    %96 = vector.shape_cast %95 : vector<8xf32> to vector<8x1xf32>
    %97 = vector.broadcast %96 : vector<8x1xf32> to vector<8x8xf32>
    %98 = arith.subf %94, %97 : vector<8x8xf32>
    %99 = math.exp %98 : vector<8x8xf32>
    %cst_30 = arith.constant dense<0.000000e+00> : vector<8xf32>
    %100 = vector.multi_reduction <add>, %99, %cst_30 [1] : vector<8x8xf32> to vector<8xf32>
    %101 = vector.shape_cast %100 : vector<8xf32> to vector<8x1xf32>
    %102 = vector.broadcast %101 : vector<8x1xf32> to vector<8x8xf32>
    %103 = arith.divf %99, %102 : vector<8x8xf32>
    %104 = vector.extract_strided_slice %41 {offsets = [0, 24], sizes = [8, 8], strides = [1, 1]} : vector<8x32xf32> to vector<8x8xf32>
    %cst_31 = arith.constant dense<0.000000e+00> : vector<8x8xf32>
    %105 = tpu.matmul %103, %104, %cst_31 {dimension_numbers = #tpu.dot_dimension_numbers<[1], [0], [0], [1], [0, 0, 1, 1], [], []>} : vector<8x8xf32>, vector<8x8xf32>, vector<8x8xf32> -> vector<8x8xf32>
    %106 = tpu.concatenate %57, %73, %89, %105 in 1 : vector<8x8xf32>, vector<8x8xf32>, vector<8x8xf32>, vector<8x8xf32> -> vector<8x32xf32>
    %107 = tpu.concatenate %55, %71, %87, %103 in 1 : vector<8x8xf32>, vector<8x8xf32>, vector<8x8xf32>, vector<8x8xf32> -> vector<8x32xf32>
    %108 = vector.extract_strided_slice %36 {offsets = [8, 0], sizes = [8, 32], strides = [1, 1]} : vector<16x32xf32> to vector<8x32xf32>
    %109 = vector.extract_strided_slice %37 {offsets = [8, 0], sizes = [8, 32], strides = [1, 1]} : vector<16x32xf32> to vector<8x32xf32>
    %110 = vector.extract_strided_slice %38 {offsets = [8, 0], sizes = [8, 32], strides = [1, 1]} : vector<16x32xf32> to vector<8x32xf32>
    %111 = vector.extract_strided_slice %108 {offsets = [0, 0], sizes = [8, 8], strides = [1, 1]} : vector<8x32xf32> to vector<8x8xf32>
    %112 = vector.extract_strided_slice %109 {offsets = [0, 0], sizes = [8, 8], strides = [1, 1]} : vector<8x32xf32> to vector<8x8xf32>
    %cst_32 = arith.constant dense<0.000000e+00> : vector<8x8xf32>
    %113 = tpu.matmul %111, %112, %cst_32 {dimension_numbers = #tpu.dot_dimension_numbers<[1], [1], [0], [0], [0, 0, 1, 0], [], []>} : vector<8x8xf32>, vector<8x8xf32>, vector<8x8xf32> -> vector<8x8xf32>
    %cst_33 = arith.constant 0.353553385 : f32
    %114 = vector.broadcast %cst_33 : f32 to vector<8x8xf32>
    %115 = arith.mulf %113, %114 : vector<8x8xf32>
    %cst_34 = arith.constant dense<0xFF800000> : vector<8xf32>
    %116 = vector.multi_reduction <maximumf>, %115, %cst_34 [1] : vector<8x8xf32> to vector<8xf32>
    %117 = vector.shape_cast %116 : vector<8xf32> to vector<8x1xf32>
    %118 = vector.broadcast %117 : vector<8x1xf32> to vector<8x8xf32>
    %119 = arith.subf %115, %118 : vector<8x8xf32>
    %120 = math.exp %119 : vector<8x8xf32>
    %cst_35 = arith.constant dense<0.000000e+00> : vector<8xf32>
    %121 = vector.multi_reduction <add>, %120, %cst_35 [1] : vector<8x8xf32> to vector<8xf32>
    %122 = vector.shape_cast %121 : vector<8xf32> to vector<8x1xf32>
    %123 = vector.broadcast %122 : vector<8x1xf32> to vector<8x8xf32>
    %124 = arith.divf %120, %123 : vector<8x8xf32>
    %125 = vector.extract_strided_slice %110 {offsets = [0, 0], sizes = [8, 8], strides = [1, 1]} : vector<8x32xf32> to vector<8x8xf32>
    %cst_36 = arith.constant dense<0.000000e+00> : vector<8x8xf32>
    %126 = tpu.matmul %124, %125, %cst_36 {dimension_numbers = #tpu.dot_dimension_numbers<[1], [0], [0], [1], [0, 0, 1, 1], [], []>} : vector<8x8xf32>, vector<8x8xf32>, vector<8x8xf32> -> vector<8x8xf32>
    %127 = vector.extract_strided_slice %108 {offsets = [0, 8], sizes = [8, 8], strides = [1, 1]} : vector<8x32xf32> to vector<8x8xf32>
    %128 = vector.extract_strided_slice %109 {offsets = [0, 8], sizes = [8, 8], strides = [1, 1]} : vector<8x32xf32> to vector<8x8xf32>
    %cst_37 = arith.constant dense<0.000000e+00> : vector<8x8xf32>
    %129 = tpu.matmul %127, %128, %cst_37 {dimension_numbers = #tpu.dot_dimension_numbers<[1], [1], [0], [0], [0, 0, 1, 0], [], []>} : vector<8x8xf32>, vector<8x8xf32>, vector<8x8xf32> -> vector<8x8xf32>
    %cst_38 = arith.constant 0.353553385 : f32
    %130 = vector.broadcast %cst_38 : f32 to vector<8x8xf32>
    %131 = arith.mulf %129, %130 : vector<8x8xf32>
    %cst_39 = arith.constant dense<0xFF800000> : vector<8xf32>
    %132 = vector.multi_reduction <maximumf>, %131, %cst_39 [1] : vector<8x8xf32> to vector<8xf32>
    %133 = vector.shape_cast %132 : vector<8xf32> to vector<8x1xf32>
    %134 = vector.broadcast %133 : vector<8x1xf32> to vector<8x8xf32>
    %135 = arith.subf %131, %134 : vector<8x8xf32>
    %136 = math.exp %135 : vector<8x8xf32>
    %cst_40 = arith.constant dense<0.000000e+00> : vector<8xf32>
    %137 = vector.multi_reduction <add>, %136, %cst_40 [1] : vector<8x8xf32> to vector<8xf32>
    %138 = vector.shape_cast %137 : vector<8xf32> to vector<8x1xf32>
    %139 = vector.broadcast %138 : vector<8x1xf32> to vector<8x8xf32>
    %140 = arith.divf %136, %139 : vector<8x8xf32>
    %141 = vector.extract_strided_slice %110 {offsets = [0, 8], sizes = [8, 8], strides = [1, 1]} : vector<8x32xf32> to vector<8x8xf32>
    %cst_41 = arith.constant dense<0.000000e+00> : vector<8x8xf32>
    %142 = tpu.matmul %140, %141, %cst_41 {dimension_numbers = #tpu.dot_dimension_numbers<[1], [0], [0], [1], [0, 0, 1, 1], [], []>} : vector<8x8xf32>, vector<8x8xf32>, vector<8x8xf32> -> vector<8x8xf32>
    %143 = vector.extract_strided_slice %108 {offsets = [0, 16], sizes = [8, 8], strides = [1, 1]} : vector<8x32xf32> to vector<8x8xf32>
    %144 = vector.extract_strided_slice %109 {offsets = [0, 16], sizes = [8, 8], strides = [1, 1]} : vector<8x32xf32> to vector<8x8xf32>
    %cst_42 = arith.constant dense<0.000000e+00> : vector<8x8xf32>
    %145 = tpu.matmul %143, %144, %cst_42 {dimension_numbers = #tpu.dot_dimension_numbers<[1], [1], [0], [0], [0, 0, 1, 0], [], []>} : vector<8x8xf32>, vector<8x8xf32>, vector<8x8xf32> -> vector<8x8xf32>
    %cst_43 = arith.constant 0.353553385 : f32
    %146 = vector.broadcast %cst_43 : f32 to vector<8x8xf32>
    %147 = arith.mulf %145, %146 : vector<8x8xf32>
    %cst_44 = arith.constant dense<0xFF800000> : vector<8xf32>
    %148 = vector.multi_reduction <maximumf>, %147, %cst_44 [1] : vector<8x8xf32> to vector<8xf32>
    %149 = vector.shape_cast %148 : vector<8xf32> to vector<8x1xf32>
    %150 = vector.broadcast %149 : vector<8x1xf32> to vector<8x8xf32>
    %151 = arith.subf %147, %150 : vector<8x8xf32>
    %152 = math.exp %151 : vector<8x8xf32>
    %cst_45 = arith.constant dense<0.000000e+00> : vector<8xf32>
    %153 = vector.multi_reduction <add>, %152, %cst_45 [1] : vector<8x8xf32> to vector<8xf32>
    %154 = vector.shape_cast %153 : vector<8xf32> to vector<8x1xf32>
    %155 = vector.broadcast %154 : vector<8x1xf32> to vector<8x8xf32>
    %156 = arith.divf %152, %155 : vector<8x8xf32>
    %157 = vector.extract_strided_slice %110 {offsets = [0, 16], sizes = [8, 8], strides = [1, 1]} : vector<8x32xf32> to vector<8x8xf32>
    %cst_46 = arith.constant dense<0.000000e+00> : vector<8x8xf32>
    %158 = tpu.matmul %156, %157, %cst_46 {dimension_numbers = #tpu.dot_dimension_numbers<[1], [0], [0], [1], [0, 0, 1, 1], [], []>} : vector<8x8xf32>, vector<8x8xf32>, vector<8x8xf32> -> vector<8x8xf32>
    %159 = vector.extract_strided_slice %108 {offsets = [0, 24], sizes = [8, 8], strides = [1, 1]} : vector<8x32xf32> to vector<8x8xf32>
    %160 = vector.extract_strided_slice %109 {offsets = [0, 24], sizes = [8, 8], strides = [1, 1]} : vector<8x32xf32> to vector<8x8xf32>
    %cst_47 = arith.constant dense<0.000000e+00> : vector<8x8xf32>
    %161 = tpu.matmul %159, %160, %cst_47 {dimension_numbers = #tpu.dot_dimension_numbers<[1], [1], [0], [0], [0, 0, 1, 0], [], []>} : vector<8x8xf32>, vector<8x8xf32>, vector<8x8xf32> -> vector<8x8xf32>
    %cst_48 = arith.constant 0.353553385 : f32
    %162 = vector.broadcast %cst_48 : f32 to vector<8x8xf32>
    %163 = arith.mulf %161, %162 : vector<8x8xf32>
    %cst_49 = arith.constant dense<0xFF800000> : vector<8xf32>
    %164 = vector.multi_reduction <maximumf>, %163, %cst_49 [1] : vector<8x8xf32> to vector<8xf32>
    %165 = vector.shape_cast %164 : vector<8xf32> to vector<8x1xf32>
    %166 = vector.broadcast %165 : vector<8x1xf32> to vector<8x8xf32>
    %167 = arith.subf %163, %166 : vector<8x8xf32>
    %168 = math.exp %167 : vector<8x8xf32>
    %cst_50 = arith.constant dense<0.000000e+00> : vector<8xf32>
    %169 = vector.multi_reduction <add>, %168, %cst_50 [1] : vector<8x8xf32> to vector<8xf32>
    %170 = vector.shape_cast %169 : vector<8xf32> to vector<8x1xf32>
    %171 = vector.broadcast %170 : vector<8x1xf32> to vector<8x8xf32>
    %172 = arith.divf %168, %171 : vector<8x8xf32>
    %173 = vector.extract_strided_slice %110 {offsets = [0, 24], sizes = [8, 8], strides = [1, 1]} : vector<8x32xf32> to vector<8x8xf32>
    %cst_51 = arith.constant dense<0.000000e+00> : vector<8x8xf32>
    %174 = tpu.matmul %172, %173, %cst_51 {dimension_numbers = #tpu.dot_dimension_numbers<[1], [0], [0], [1], [0, 0, 1, 1], [], []>} : vector<8x8xf32>, vector<8x8xf32>, vector<8x8xf32> -> vector<8x8xf32>
    %175 = tpu.concatenate %126, %142, %158, %174 in 1 : vector<8x8xf32>, vector<8x8xf32>, vector<8x8xf32>, vector<8x8xf32> -> vector<8x32xf32>
    %176 = tpu.concatenate %124, %140, %156, %172 in 1 : vector<8x8xf32>, vector<8x8xf32>, vector<8x8xf32>, vector<8x8xf32> -> vector<8x32xf32>
    %177 = tpu.concatenate %106, %175 in 0 : vector<8x32xf32>, vector<8x32xf32> -> vector<16x32xf32>
    %178 = tpu.concatenate %107, %176 in 0 : vector<8x32xf32>, vector<8x32xf32> -> vector<16x32xf32>
    %179 = vector.extract_strided_slice %1 {offsets = [0, 96], sizes = [32, 40], strides = [1, 1]} : vector<32x272xf32> to vector<32x40xf32>
    %cst_52 = arith.constant dense<0.000000e+00> : vector<16x40xf32>
    %180 = tpu.matmul %177, %179, %cst_52 {dimension_numbers = #tpu.dot_dimension_numbers<[1], [0], [0], [1], [0, 0, 1, 1], [], []>} : vector<16x32xf32>, vector<32x40xf32>, vector<16x40xf32> -> vector<16x40xf32>
    %181 = vector.broadcast %8 : vector<1x40xf32> to vector<16x40xf32>
    %182 = arith.addf %180, %181 : vector<16x40xf32>
    %183 = vector.extract_strided_slice %182 {offsets = [0, 0], sizes = [16, 32], strides = [1, 1]} : vector<16x40xf32> to vector<16x32xf32>
    %184 = vector.extract_strided_slice %182 {offsets = [0, 32], sizes = [16, 8], strides = [1, 1]} : vector<16x40xf32> to vector<16x8xf32>
    %cst_53 = arith.constant 5.000000e-01 : f32
    %185 = vector.broadcast %cst_53 : f32 to vector<16x8xf32>
    %186 = arith.mulf %185, %184 : vector<16x8xf32>
    %cst_54 = arith.constant 2.000000e+00 : f32
    %187 = math.sqrt %cst_54 : f32
    %cst_55 = arith.constant 1.000000e+00 : f32
    %188 = arith.divf %cst_55, %187 : f32
    %189 = vector.broadcast %188 : f32 to vector<16x8xf32>
    %190 = arith.mulf %184, %189 : vector<16x8xf32>
    %191 = math.absf %190 : vector<16x8xf32>
    %cst_56 = arith.constant 0.327591091 : f32
    %192 = vector.broadcast %cst_56 : f32 to vector<16x8xf32>
    %193 = arith.mulf %192, %191 : vector<16x8xf32>
    %cst_57 = arith.constant 1.000000e+00 : f32
    %194 = vector.broadcast %cst_57 : f32 to vector<16x8xf32>
    %195 = arith.addf %194, %193 : vector<16x8xf32>
    %cst_58 = arith.constant 1.000000e+00 : f32
    %196 = vector.broadcast %cst_58 : f32 to vector<16x8xf32>
    %197 = arith.divf %196, %195 : vector<16x8xf32>
    %cst_59 = arith.constant 1.06140542 : f32
    %198 = vector.broadcast %cst_59 : f32 to vector<16x8xf32>
    %199 = arith.mulf %198, %197 : vector<16x8xf32>
    %cst_60 = arith.constant -1.45315206 : f32
    %200 = vector.broadcast %cst_60 : f32 to vector<16x8xf32>
    %201 = arith.addf %199, %200 : vector<16x8xf32>
    %202 = arith.mulf %201, %197 : vector<16x8xf32>
    %cst_61 = arith.constant 1.42141378 : f32
    %203 = vector.broadcast %cst_61 : f32 to vector<16x8xf32>
    %204 = arith.addf %202, %203 : vector<16x8xf32>
    %205 = arith.mulf %204, %197 : vector<16x8xf32>
    %cst_62 = arith.constant -0.284496725 : f32
    %206 = vector.broadcast %cst_62 : f32 to vector<16x8xf32>
    %207 = arith.addf %205, %206 : vector<16x8xf32>
    %208 = arith.mulf %207, %197 : vector<16x8xf32>
    %cst_63 = arith.constant 0.254829586 : f32
    %209 = vector.broadcast %cst_63 : f32 to vector<16x8xf32>
    %210 = arith.addf %208, %209 : vector<16x8xf32>
    %211 = arith.mulf %210, %197 : vector<16x8xf32>
    %cst_64 = arith.constant 0.000000e+00 : f32
    %212 = vector.broadcast %cst_64 : f32 to vector<16x8xf32>
    %213 = arith.subf %212, %191 : vector<16x8xf32>
    %214 = arith.mulf %213, %191 : vector<16x8xf32>
    %215 = math.exp %214 : vector<16x8xf32>
    %216 = arith.mulf %211, %215 : vector<16x8xf32>
    %cst_65 = arith.constant 1.000000e+00 : f32
    %217 = vector.broadcast %cst_65 : f32 to vector<16x8xf32>
    %218 = arith.subf %217, %216 : vector<16x8xf32>
    %cst_66 = arith.constant 0.000000e+00 : f32
    %219 = vector.broadcast %cst_66 : f32 to vector<16x8xf32>
    %220 = arith.cmpf oge, %190, %219 : vector<16x8xf32>
    %cst_67 = arith.constant 0.000000e+00 : f32
    %221 = vector.broadcast %cst_67 : f32 to vector<16x8xf32>
    %222 = arith.subf %221, %218 : vector<16x8xf32>
    %223 = arith.select %220, %218, %222 : vector<16x8xi1>, vector<16x8xf32>
    %cst_68 = arith.constant 1.000000e+00 : f32
    %224 = vector.broadcast %cst_68 : f32 to vector<16x8xf32>
    %225 = arith.addf %224, %223 : vector<16x8xf32>
    %226 = arith.mulf %186, %225 : vector<16x8xf32>
    %227 = vector.extract_strided_slice %3 {offsets = [136, 0], sizes = [8, 32], strides = [1, 1]} : vector<144x32xf32> to vector<8x32xf32>
    %cst_69 = arith.constant dense<0.000000e+00> : vector<16x32xf32>
    %228 = tpu.matmul %226, %227, %cst_69 {dimension_numbers = #tpu.dot_dimension_numbers<[1], [0], [0], [1], [0, 0, 1, 1], [], []>} : vector<16x8xf32>, vector<8x32xf32>, vector<16x32xf32> -> vector<16x32xf32>
    %229 = arith.addf %183, %228 : vector<16x32xf32>
    %230 = vector.broadcast %9 : vector<1x32xf32> to vector<16x32xf32>
    %231 = arith.addf %229, %230 : vector<16x32xf32>
    %232 = arith.addf %0, %231 : vector<16x32xf32>
    %cst_70 = arith.constant dense<0.000000e+00> : vector<16xf32>
    %233 = vector.multi_reduction <add>, %232, %cst_70 [1] : vector<16x32xf32> to vector<16xf32>
    %234 = vector.shape_cast %233 : vector<16xf32> to vector<16x1xf32>
    %cst_71 = arith.constant 3.200000e+01 : f32
    %235 = vector.broadcast %cst_71 : f32 to vector<16x1xf32>
    %236 = arith.divf %234, %235 : vector<16x1xf32>
    %237 = vector.broadcast %236 : vector<16x1xf32> to vector<16x32xf32>
    %238 = arith.subf %232, %237 : vector<16x32xf32>
    %239 = arith.mulf %238, %238 : vector<16x32xf32>
    %cst_72 = arith.constant dense<0.000000e+00> : vector<16xf32>
    %240 = vector.multi_reduction <add>, %239, %cst_72 [1] : vector<16x32xf32> to vector<16xf32>
    %241 = vector.shape_cast %240 : vector<16xf32> to vector<16x1xf32>
    %cst_73 = arith.constant 3.200000e+01 : f32
    %242 = vector.broadcast %cst_73 : f32 to vector<16x1xf32>
    %243 = arith.divf %241, %242 : vector<16x1xf32>
    %244 = vector.broadcast %236 : vector<16x1xf32> to vector<16x32xf32>
    %245 = arith.subf %232, %244 : vector<16x32xf32>
    %cst_74 = arith.constant 9.99999974E-6 : f32
    %246 = vector.broadcast %cst_74 : f32 to vector<16x1xf32>
    %247 = arith.addf %243, %246 : vector<16x1xf32>
    %248 = math.rsqrt %247 : vector<16x1xf32>
    %249 = vector.broadcast %248 : vector<16x1xf32> to vector<16x32xf32>
    %250 = arith.mulf %245, %249 : vector<16x32xf32>
    %251 = vector.broadcast %6 : vector<1x32xf32> to vector<16x32xf32>
    %252 = arith.mulf %250, %251 : vector<16x32xf32>
    %253 = vector.broadcast %7 : vector<1x32xf32> to vector<16x32xf32>
    %254 = arith.addf %252, %253 : vector<16x32xf32>
    %255 = vector.extract_strided_slice %1 {offsets = [0, 136], sizes = [32, 136], strides = [1, 1]} : vector<32x272xf32> to vector<32x136xf32>
    %cst_75 = arith.constant dense<0.000000e+00> : vector<16x136xf32>
    %256 = tpu.matmul %254, %255, %cst_75 {dimension_numbers = #tpu.dot_dimension_numbers<[1], [0], [0], [1], [0, 0, 1, 1], [], []>} : vector<16x32xf32>, vector<32x136xf32>, vector<16x136xf32> -> vector<16x136xf32>
    %257 = vector.broadcast %10 : vector<1x136xf32> to vector<16x136xf32>
    %258 = arith.addf %256, %257 : vector<16x136xf32>
    %cst_76 = arith.constant 5.000000e-01 : f32
    %259 = vector.broadcast %cst_76 : f32 to vector<16x136xf32>
    %260 = arith.mulf %259, %258 : vector<16x136xf32>
    %cst_77 = arith.constant 2.000000e+00 : f32
    %261 = math.sqrt %cst_77 : f32
    %cst_78 = arith.constant 1.000000e+00 : f32
    %262 = arith.divf %cst_78, %261 : f32
    %263 = vector.broadcast %262 : f32 to vector<16x136xf32>
    %264 = arith.mulf %258, %263 : vector<16x136xf32>
    %265 = math.absf %264 : vector<16x136xf32>
    %cst_79 = arith.constant 0.327591091 : f32
    %266 = vector.broadcast %cst_79 : f32 to vector<16x136xf32>
    %267 = arith.mulf %266, %265 : vector<16x136xf32>
    %cst_80 = arith.constant 1.000000e+00 : f32
    %268 = vector.broadcast %cst_80 : f32 to vector<16x136xf32>
    %269 = arith.addf %268, %267 : vector<16x136xf32>
    %cst_81 = arith.constant 1.000000e+00 : f32
    %270 = vector.broadcast %cst_81 : f32 to vector<16x136xf32>
    %271 = arith.divf %270, %269 : vector<16x136xf32>
    %cst_82 = arith.constant 1.06140542 : f32
    %272 = vector.broadcast %cst_82 : f32 to vector<16x136xf32>
    %273 = arith.mulf %272, %271 : vector<16x136xf32>
    %cst_83 = arith.constant -1.45315206 : f32
    %274 = vector.broadcast %cst_83 : f32 to vector<16x136xf32>
    %275 = arith.addf %273, %274 : vector<16x136xf32>
    %276 = arith.mulf %275, %271 : vector<16x136xf32>
    %cst_84 = arith.constant 1.42141378 : f32
    %277 = vector.broadcast %cst_84 : f32 to vector<16x136xf32>
    %278 = arith.addf %276, %277 : vector<16x136xf32>
    %279 = arith.mulf %278, %271 : vector<16x136xf32>
    %cst_85 = arith.constant -0.284496725 : f32
    %280 = vector.broadcast %cst_85 : f32 to vector<16x136xf32>
    %281 = arith.addf %279, %280 : vector<16x136xf32>
    %282 = arith.mulf %281, %271 : vector<16x136xf32>
    %cst_86 = arith.constant 0.254829586 : f32
    %283 = vector.broadcast %cst_86 : f32 to vector<16x136xf32>
    %284 = arith.addf %282, %283 : vector<16x136xf32>
    %285 = arith.mulf %284, %271 : vector<16x136xf32>
    %cst_87 = arith.constant 0.000000e+00 : f32
    %286 = vector.broadcast %cst_87 : f32 to vector<16x136xf32>
    %287 = arith.subf %286, %265 : vector<16x136xf32>
    %288 = arith.mulf %287, %265 : vector<16x136xf32>
    %289 = math.exp %288 : vector<16x136xf32>
    %290 = arith.mulf %285, %289 : vector<16x136xf32>
    %cst_88 = arith.constant 1.000000e+00 : f32
    %291 = vector.broadcast %cst_88 : f32 to vector<16x136xf32>
    %292 = arith.subf %291, %290 : vector<16x136xf32>
    %cst_89 = arith.constant 0.000000e+00 : f32
    %293 = vector.broadcast %cst_89 : f32 to vector<16x136xf32>
    %294 = arith.cmpf oge, %264, %293 : vector<16x136xf32>
    %cst_90 = arith.constant 0.000000e+00 : f32
    %295 = vector.broadcast %cst_90 : f32 to vector<16x136xf32>
    %296 = arith.subf %295, %292 : vector<16x136xf32>
    %297 = arith.select %294, %292, %296 : vector<16x136xi1>, vector<16x136xf32>
    %cst_91 = arith.constant 1.000000e+00 : f32
    %298 = vector.broadcast %cst_91 : f32 to vector<16x136xf32>
    %299 = arith.addf %298, %297 : vector<16x136xf32>
    %300 = arith.mulf %260, %299 : vector<16x136xf32>
    %301 = vector.extract_strided_slice %3 {offsets = [0, 0], sizes = [136, 32], strides = [1, 1]} : vector<144x32xf32> to vector<136x32xf32>
    %cst_92 = arith.constant dense<0.000000e+00> : vector<16x32xf32>
    %302 = tpu.matmul %300, %301, %cst_92 {dimension_numbers = #tpu.dot_dimension_numbers<[1], [0], [0], [1], [0, 0, 1, 1], [], []>} : vector<16x136xf32>, vector<136x32xf32>, vector<16x32xf32> -> vector<16x32xf32>
    %303 = arith.addf %232, %302 : vector<16x32xf32>
    %304 = vector.broadcast %11 : vector<1x32xf32> to vector<16x32xf32>
    %305 = arith.addf %303, %304 : vector<16x32xf32>
    %cst_93 = arith.constant 0.000000e+00 : f32
    %306 = vector.broadcast %cst_93 : f32 to vector<16x64xf32>
    %307 = tpu.concatenate %305, %178, %306 in 1 : vector<16x32xf32>, vector<16x32xf32>, vector<16x64xf32> -> vector<16x128xf32>
    %c0_94 = arith.constant 0 : index
    %c0_95 = arith.constant 0 : index
    %308 = vector.load %arg4[%c0_94, %c0_95] : memref<16x128xf32, #tpu.memory_space<vmem>>, vector<16x128xf32>
    tpu.vector_store %arg4[%c0_94, %c0_95], %307 {strides = array<i32>} : memref<16x128xf32, #tpu.memory_space<vmem>>, vector<16x128xf32>,
    return
  }
}

</mosaic_0001>

<llo_original>
// kernel: tpu_custom_call.1
$region0: #{tpu_custom_call.1}
  #allocation0 [shape = 'u32[]', space=smem, size = 0x4, offset = 0x4, fixed_abs, tag = 'smem constant byte address 0x4 - core index']
  #allocation1 [shape = 'u32[72,128]{1,0:T(1,128)}', space=vmem, size = 0x9000, scoped, tag = 'internal scratch']
  %s0 = inlined_call_operand.vmem [shape: f32[16,32], index: 0, kind: input, shape index: {}]
  %s1 = inlined_call_operand.vmem [shape: f32[32,272], index: 1, kind: input, shape index: {}]
  %s2 = inlined_call_operand.vmem [shape: f32[8,136], index: 2, kind: input, shape index: {}]
  %s3 = inlined_call_operand.vmem [shape: f32[144,32], index: 3, kind: input, shape index: {}]
  %s4 = inlined_call_operand.hbm [shape: f32[16,128], index: 4, kind: output, shape index: {}]
  %s5 = sld [smem:[#allocation0]]
  $region26: #{tpu_custom_call.1} parent=0
    _
  %s7 = ssub.s32 1, %s5
  %s8 = scalar_select 0, %s7, %s5
  $region1: #{tpu_custom_call.1} parent=0
    #allocation2 [shape = 'u8[8192]{0}', space=vmem, size = 0x2000, scoped, tag = 'output window, operand 0, single buffered']
    #allocation3 [shape = 's32[1]{0}', space=sflag, size = 0x4, scoped, tag = 'scoped memory for tpu_custom_call.1']
    %9 = vsyncpa [#allocation3], 0
    // Predicated region
    $region2: #{tpu_custom_call.1} parent=1 // pred_check
      _
    $region3: #{tpu_custom_call.1} parent=1 // pred_check_branch
      %11 = sbr.rel (0) target = $region5
    $region4: #{tpu_custom_call.1} parent=1 // pred_region
      _
    $region5: #{tpu_custom_call.1} parent=1 // pred_fallthru
      _
    // Predicated region
    $region6: #{tpu_custom_call.1} parent=1 // pred_check
      _
    $region7: #{tpu_custom_call.1} parent=1 // pred_check_branch
      %13 = sbr.rel (0) target = $region9
    $region8: #{tpu_custom_call.1} parent=1 // pred_region
      _
    $region9: #{tpu_custom_call.1} parent=1 // pred_fallthru
      _
    // Predicated region
    $region10: #{tpu_custom_call.1} parent=1 // pred_check
      _
    $region11: #{tpu_custom_call.1} parent=1 // pred_check_branch
      %15 = sbr.rel (0) target = $region13
    $region12: #{tpu_custom_call.1} parent=1 // pred_region
      _
    $region13: #{tpu_custom_call.1} parent=1 // pred_fallthru
      _
    // Predicated region
    $region14: #{tpu_custom_call.1} parent=1 // pred_check
      _
    $region15: #{tpu_custom_call.1} parent=1 // pred_check_branch
      %17 = sbr.rel (0) target = $region17
    $region16: #{tpu_custom_call.1} parent=1 // pred_region
      _
    $region17: #{tpu_custom_call.1} parent=1 // pred_fallthru
      _
    %v18 = vld [vmem:[%s0] sm:$0xff]
    %v19 = vld [vmem:[%s0 + $0x8] sm:$0xff]
    %v20 = vld [vmem:[%s1] sm:$0xff]
    %v21 = vld [vmem:[%s1 + $0x8] sm:$0xff]
    %v22 = vld [vmem:[%s1 + $0x10] sm:$0xff]
    %v23 = vld [vmem:[%s1 + $0x18] sm:$0xff]
    %v24 = vld [vmem:[%s1 + $0x20] sm:$0xff]
    %v25 = vld [vmem:[%s1 + $0x28] sm:$0xff]
    %v26 = vld [vmem:[%s1 + $0x30] sm:$0xff]
    %v27 = vld [vmem:[%s1 + $0x38] sm:$0xff]
    %v28 = vld [vmem:[%s1 + $0x40] sm:$0xff]
    %v29 = vld [vmem:[%s1 + $0x48] sm:$0xff]
    %v30 = vld [vmem:[%s1 + $0x50] sm:$0xff]
    %v31 = vld [vmem:[%s1 + $0x58] sm:$0xff]
    %v32 = vld [vmem:[%s2] sm:$0xff]
    %v33 = vld [vmem:[%s2 + $0x8] sm:$0xff]
    %v34 = vld [vmem:[%s3] sm:$0xff]
    %v35 = vld [vmem:[%s3 + $0x8] sm:$0xff]
    %v36 = vld [vmem:[%s3 + $0x10] sm:$0xff]
    %v37 = vld [vmem:[%s3 + $0x18] sm:$0xff]
    %v38 = vld [vmem:[%s3 + $0x20] sm:$0xff]
    %v39 = vld [vmem:[%s3 + $0x28] sm:$0xff]
    %v40 = vld [vmem:[%s3 + $0x30] sm:$0xff]
    %v41 = vld [vmem:[%s3 + $0x38] sm:$0xff]
    %v42 = vld [vmem:[%s3 + $0x40] sm:$0xff]
    %v43 = vld [vmem:[%s3 + $0x48] sm:$0xff]
    %v44 = vld [vmem:[%s3 + $0x50] sm:$0xff]
    %v45 = vld [vmem:[%s3 + $0x58] sm:$0xff]
    %v46 = vld [vmem:[%s3 + $0x60] sm:$0xff]
    %v47 = vld [vmem:[%s3 + $0x68] sm:$0xff]
    %v48 = vld [vmem:[%s3 + $0x70] sm:$0xff]
    %v49 = vld [vmem:[%s3 + $0x78] sm:$0xff]
    %v50 = vld [vmem:[%s3 + $0x80] sm:$0xff]
    %v51 = vld [vmem:[%s3 + $0x88] sm:$0xff]
    %vm52 = vcmask 261120
    %v53 = vsel %vm52, %v18, 0.0
    %54 = vadd.xlane.f32.xlu0 %v53
    %v55 = vpop.xlane.xlu0 %54
    %v56 = vsel %vm52, %v19, 0.0
    %57 = vadd.xlane.f32.xlu0 %v56
    %v58 = vpop.xlane.xlu0 %57
    %v59 = vrcp.pop 32.0
    %v60 = vmul.f32 32.0, %v59
    %v61 = vsub.f32 1.0, %v60
    %v62 = vmul.f32 %v59, %v61
    %v63 = vadd.f32 %v59, %v62
    %vm64 = vweird.f32 %v59
    %v65 = vsel %vm64, %v59, %v63
    %v66 = vmul.f32 %v55, %v65
    %v67 = vmul.f32 %v58, %v65
    %v68 = vsub.f32 %v18, %v66
    %v69 = vsub.f32 %v19, %v67
    %v70 = vmul.f32 %v68, %v68
    %v71 = vmul.f32 %v69, %v69
    %v72 = vsel %vm52, %v70, 0.0
    %73 = vadd.xlane.f32.xlu0 %v72
    %v74 = vpop.xlane.xlu0 %73
    %v75 = vsel %vm52, %v71, 0.0
    %76 = vadd.xlane.f32.xlu0 %v75
    %v77 = vpop.xlane.xlu0 %76
    %v78 = vmul.f32 %v74, %v65
    %v79 = vmul.f32 %v77, %v65
    %v80 = vadd.f32 %v78, 1e-05
    %v81 = vadd.f32 %v79, 1e-05
    %v82 = vrsqrt.pop %v80
    %v83 = vmul.f32 %v82, %v80
    %v84 = vmul.f32 %v83, %v82
    %v85 = vmul.f32 0.5, %v84
    %v86 = vsub.f32 1.5, %v85
    %v87 = vmul.f32 %v82, %v86
    %vm88 = vweird.f32 %v80
    %vm89 = vweird.f32 %v82
    %vm90 = vmor %vm88, %vm89
    %v91 = vsel %vm90, %v82, %v87
    %v92 = vrsqrt.pop %v81
    %v93 = vmul.f32 %v92, %v81
    %v94 = vmul.f32 %v93, %v92
    %v95 = vmul.f32 0.5, %v94
    %v96 = vsub.f32 1.5, %v95
    %v97 = vmul.f32 %v92, %v96
    %vm98 = vweird.f32 %v81
    %vm99 = vweird.f32 %v92
    %vm100 = vmor %vm98, %vm99
    %v101 = vsel %vm100, %v92, %v97
    %v102 = vmul.f32 %v68, %v91
    %v103 = vmul.f32 %v69, %v101
    %v104 = vperm.slane %v32, 0
    %v105 = vmul.f32 %v102, %v104
    %v106 = vmul.f32 %v103, %v104
    %v107 = vperm.slane %v32, 1
    %v108 = vadd.f32 %v105, %v107
    %v109 = vadd.f32 %v106, %v107
    %v111 = vsel %vm52, %v108, 0
    %v114 = vsel %vm52, %v109, 0
    %116 = vmatpush.msra.mxu0 0.0
    %117 = vmatpush.msra.mxu0 0.0
    %118 = vmatpush.msra.mxu0 0.0
    %119 = vmatpush.msra.mxu0 0.0
    %120 = vmatpush.msra.mxu0 0.0
    %121 = vmatpush.msra.mxu0 0.0
    %122 = vmatpush.msra.mxu0 0.0
    %123 = vmatpush.msra.mxu0 0.0
    %124 = vmatpush.msra.mxu0 0.0
    %125 = vmatpush.msra.mxu0 0.0
    %126 = vmatpush.msra.mxu0 0.0
    %127 = vmatpush.msra.mxu0 0.0
    %128 = vmatpush.msra.mxu0 %v29
    %129 = vmatpush.msra.mxu0 %v26
    %130 = vmatpush.msra.mxu0 %v23
    %131 = vmatpush.msra.mxu0 %v20
    %132 = vmatmul.f32.gmra.mxu0 %v111
    %v133 = vpop.f32.mrf.mxu0
    %v134 = vadd.f32 0.0, %v133
    %135 = vmatmul.f32.gmra.mxu0 %v114
    %v136 = vpop.f32.mrf.mxu0
    %v137 = vadd.f32 0.0, %v136
    %138 = vdwg.mxu0
    %140 = vrot.lane.b32.xlu0 %v134, 96
    %v141 = vpop.permute.xlu0 %140
    %vm142 = vcmask 64512
    %v143 = vsel %vm142, %v134, 0
    %v145 = vsel %vm142, %v141, 0
    %147 = vmatpush.xpose.msra.mxu0 0.0
    %148 = vmatpush.xpose.msra.mxu0 0.0
    %149 = vmatpush.xpose.msra.mxu0 0.0
    %150 = vmatpush.xpose.msra.mxu0 0.0
    %151 = vmatpush.xpose.msra.mxu0 0.0
    %152 = vmatpush.xpose.msra.mxu0 0.0
    %153 = vmatpush.xpose.msra.mxu0 0.0
    %154 = vmatpush.xpose.msra.mxu0 0.0
    %155 = vmatpush.xpose.msra.mxu0 0.0
    %156 = vmatpush.xpose.msra.mxu0 0.0
    %157 = vmatpush.xpose.msra.mxu0 0.0
    %158 = vmatpush.xpose.msra.mxu0 0.0
    %159 = vmatpush.xpose.msra.mxu0 0.0
    %160 = vmatpush.xpose.msra.mxu0 0.0
    %161 = vmatpush.xpose.msra.mxu0 0.0
    %162 = vmatpush.xpose.msra.mxu0 %v145
    %163 = vmatmul.f32.gmra.mxu0 %v143
    %v164 = vpop.f32.mrf.mxu0
    %v165 = vadd.f32 0.0, %v164
    %166 = vdwg.mxu0
    %v167 = vmul.f32 %v165, 0.35355338
    %v168 = vsel %vm142, %v167, -inf
    %169 = vmax.xlane.f32.xlu0 %v168
    %v170 = vpop.xlane.xlu0 %169
    %v171 = vsub.f32 %v167, %v170
    %v172 = vmul.f32 %v171, 1.442695
    %v173 = vpow.pop %v172
    %v174 = vsel %vm142, %v173, 0.0
    %175 = vadd.xlane.f32.xlu0 %v174
    %v176 = vpop.xlane.xlu0 %175
    %v177 = vrcp.pop %v176
    %v178 = vmul.f32 %v176, %v177
    %v179 = vsub.f32 1.0, %v178
    %v180 = vmul.f32 %v177, %v179
    %v181 = vadd.f32 %v177, %v180
    %vm182 = vweird.f32 %v176
    %vm183 = vweird.f32 %v177
    %vm184 = vmor %vm182, %vm183
    %v185 = vsel %vm184, %v177, %v181
    %v186 = vand.u32 2147483647, %v176
    %vm187 = vcmp.eq.f32.partialorder %v186, 8.507059e+37
    %v188 = vand.u32 %v176, 2147483648
    %v189 = vor.u32 1.1754944e-38, %v188
    %v190 = vsel %vm187, %v189, %v185
    %v191 = vmul.f32 %v173, %v190
    %192 = vrot.lane.b32.xlu0 %v134, 64
    %v193 = vpop.permute.xlu0 %192
    %v196 = vsel %vm142, %v191, 0
    %198 = vmatpush.msra.mxu0 0.0
    %199 = vmatpush.msra.mxu0 0.0
    %200 = vmatpush.msra.mxu0 0.0
    %201 = vmatpush.msra.mxu0 0.0
    %202 = vmatpush.msra.mxu0 0.0
    %203 = vmatpush.msra.mxu0 0.0
    %204 = vmatpush.msra.mxu0 0.0
    %205 = vmatpush.msra.mxu0 0.0
    %206 = vmatpush.msra.mxu0 0.0
    %207 = vmatpush.msra.mxu0 0.0
    %208 = vmatpush.msra.mxu0 0.0
    %209 = vmatpush.msra.mxu0 0.0
    %210 = vmatpush.msra.mxu0 0.0
    %211 = vmatpush.msra.mxu0 0.0
    %212 = vmatpush.msra.mxu0 0.0
    %213 = vmatpush.msra.mxu0 %v193
    %214 = vmatmul.f32.gmra.mxu0 %v196
    %v215 = vpop.f32.mrf.mxu0
    %v216 = vadd.f32 0.0, %v215
    %217 = vdwg.mxu0
    %218 = vrot.lane.b32.xlu0 %v134, 120
    %v219 = vpop.permute.xlu0 %218
    %220 = vrot.lane.b32.xlu0 %v134, 88
    %v221 = vpop.permute.xlu0 %220
    %v222 = vsel %vm142, %v219, 0
    %v224 = vsel %vm142, %v221, 0
    %226 = vmatpush.xpose.msra.mxu0 0.0
    %227 = vmatpush.xpose.msra.mxu0 0.0
    %228 = vmatpush.xpose.msra.mxu0 0.0
    %229 = vmatpush.xpose.msra.mxu0 0.0
    %230 = vmatpush.xpose.msra.mxu0 0.0
    %231 = vmatpush.xpose.msra.mxu0 0.0
    %232 = vmatpush.xpose.msra.mxu0 0.0
    %233 = vmatpush.xpose.msra.mxu0 0.0
    %234 = vmatpush.xpose.msra.mxu0 0.0
    %235 = vmatpush.xpose.msra.mxu0 0.0
    %236 = vmatpush.xpose.msra.mxu0 0.0
    %237 = vmatpush.xpose.msra.mxu0 0.0
    %238 = vmatpush.xpose.msra.mxu0 0.0
    %239 = vmatpush.xpose.msra.mxu0 0.0
    %240 = vmatpush.xpose.msra.mxu0 0.0
    %241 = vmatpush.xpose.msra.mxu0 %v224
    %242 = vmatmul.f32.gmra.mxu0 %v222
    %v243 = vpop.f32.mrf.mxu0
    %v244 = vadd.f32 0.0, %v243
    %245 = vdwg.mxu0
    %v246 = vmul.f32 %v244, 0.35355338
    %v247 = vsel %vm142, %v246, -inf
    %248 = vmax.xlane.f32.xlu0 %v247
    %v249 = vpop.xlane.xlu0 %248
    %v250 = vsub.f32 %v246, %v249
    %v251 = vmul.f32 %v250, 1.442695
    %v252 = vpow.pop %v251
    %v253 = vsel %vm142, %v252, 0.0
    %254 = vadd.xlane.f32.xlu0 %v253
    %v255 = vpop.xlane.xlu0 %254
    %v256 = vrcp.pop %v255
    %v257 = vmul.f32 %v255, %v256
    %v258 = vsub.f32 1.0, %v257
    %v259 = vmul.f32 %v256, %v258
    %v260 = vadd.f32 %v256, %v259
    %vm261 = vweird.f32 %v255
    %vm262 = vweird.f32 %v256
    %vm263 = vmor %vm261, %vm262
    %v264 = vsel %vm263, %v256, %v260
    %v265 = vand.u32 2147483647, %v255
    %vm266 = vcmp.eq.f32.partialorder %v265, 8.507059e+37
    %v267 = vand.u32 %v255, 2147483648
    %v268 = vor.u32 1.1754944e-38, %v267
    %v269 = vsel %vm266, %v268, %v264
    %v270 = vmul.f32 %v252, %v269
    %271 = vrot.lane.b32.xlu0 %v134, 56
    %v272 = vpop.permute.xlu0 %271
    %v275 = vsel %vm142, %v270, 0
    %277 = vmatpush.msra.mxu0 0.0
    %278 = vmatpush.msra.mxu0 0.0
    %279 = vmatpush.msra.mxu0 0.0
    %280 = vmatpush.msra.mxu0 0.0
    %281 = vmatpush.msra.mxu0 0.0
    %282 = vmatpush.msra.mxu0 0.0
    %283 = vmatpush.msra.mxu0 0.0
    %284 = vmatpush.msra.mxu0 0.0
    %285 = vmatpush.msra.mxu0 0.0
    %286 = vmatpush.msra.mxu0 0.0
    %287 = vmatpush.msra.mxu0 0.0
    %288 = vmatpush.msra.mxu0 0.0
    %289 = vmatpush.msra.mxu0 0.0
    %290 = vmatpush.msra.mxu0 0.0
    %291 = vmatpush.msra.mxu0 0.0
    %292 = vmatpush.msra.mxu0 %v272
    %293 = vmatmul.f32.gmra.mxu0 %v275
    %v294 = vpop.f32.mrf.mxu0
    %v295 = vadd.f32 0.0, %v294
    %296 = vdwg.mxu0
    %297 = vrot.lane.b32.xlu0 %v134, 112
    %v298 = vpop.permute.xlu0 %297
    %299 = vrot.lane.b32.xlu0 %v134, 80
    %v300 = vpop.permute.xlu0 %299
    %v301 = vsel %vm142, %v298, 0
    %v303 = vsel %vm142, %v300, 0
    %305 = vmatpush.xpose.msra.mxu0 0.0
    %306 = vmatpush.xpose.msra.mxu0 0.0
    %307 = vmatpush.xpose.msra.mxu0 0.0
    %308 = vmatpush.xpose.msra.mxu0 0.0
    %309 = vmatpush.xpose.msra.mxu0 0.0
    %310 = vmatpush.xpose.msra.mxu0 0.0
    %311 = vmatpush.xpose.msra.mxu0 0.0
    %312 = vmatpush.xpose.msra.mxu0 0.0
    %313 = vmatpush.xpose.msra.mxu0 0.0
    %314 = vmatpush.xpose.msra.mxu0 0.0
    %315 = vmatpush.xpose.msra.mxu0 0.0
    %316 = vmatpush.xpose.msra.mxu0 0.0
    %317 = vmatpush.xpose.msra.mxu0 0.0
    %318 = vmatpush.xpose.msra.mxu0 0.0
    %319 = vmatpush.xpose.msra.mxu0 0.0
    %320 = vmatpush.xpose.msra.mxu0 %v303
    %321 = vmatmul.f32.gmra.mxu0 %v301
    %v322 = vpop.f32.mrf.mxu0
    %v323 = vadd.f32 0.0, %v322
    %324 = vdwg.mxu0
    %v325 = vmul.f32 %v323, 0.35355338
    %v326 = vsel %vm142, %v325, -inf
    %327 = vmax.xlane.f32.xlu0 %v326
    %v328 = vpop.xlane.xlu0 %327
    %v329 = vsub.f32 %v325, %v328
    %v330 = vmul.f32 %v329, 1.442695
    %v331 = vpow.pop %v330
    %v332 = vsel %vm142, %v331, 0.0
    %333 = vadd.xlane.f32.xlu0 %v332
    %v334 = vpop.xlane.xlu0 %333
    %v335 = vrcp.pop %v334
    %v336 = vmul.f32 %v334, %v335
    %v337 = vsub.f32 1.0, %v336
    %v338 = vmul.f32 %v335, %v337
    %v339 = vadd.f32 %v335, %v338
    %vm340 = vweird.f32 %v334
    %vm341 = vweird.f32 %v335
    %vm342 = vmor %vm340, %vm341
    %v343 = vsel %vm342, %v335, %v339
    %v344 = vand.u32 2147483647, %v334
    %vm345 = vcmp.eq.f32.partialorder %v344, 8.507059e+37
    %v346 = vand.u32 %v334, 2147483648
    %v347 = vor.u32 1.1754944e-38, %v346
    %v348 = vsel %vm345, %v347, %v343
    %v349 = vmul.f32 %v331, %v348
    %350 = vrot.lane.b32.xlu0 %v134, 48
    %v351 = vpop.permute.xlu0 %350
    %v354 = vsel %vm142, %v349, 0
    %356 = vmatpush.msra.mxu0 0.0
    %357 = vmatpush.msra.mxu0 0.0
    %358 = vmatpush.msra.mxu0 0.0
    %359 = vmatpush.msra.mxu0 0.0
    %360 = vmatpush.msra.mxu0 0.0
    %361 = vmatpush.msra.mxu0 0.0
    %362 = vmatpush.msra.mxu0 0.0
    %363 = vmatpush.msra.mxu0 0.0
    %364 = vmatpush.msra.mxu0 0.0
    %365 = vmatpush.msra.mxu0 0.0
    %366 = vmatpush.msra.mxu0 0.0
    %367 = vmatpush.msra.mxu0 0.0
    %368 = vmatpush.msra.mxu0 0.0
    %369 = vmatpush.msra.mxu0 0.0
    %370 = vmatpush.msra.mxu0 0.0
    %371 = vmatpush.msra.mxu0 %v351
    %372 = vmatmul.f32.gmra.mxu0 %v354
    %v373 = vpop.f32.mrf.mxu0
    %v374 = vadd.f32 0.0, %v373
    %375 = vdwg.mxu0
    %376 = vrot.lane.b32.xlu0 %v134, 104
    %v377 = vpop.permute.xlu0 %376
    %378 = vrot.lane.b32.xlu0 %v134, 72
    %v379 = vpop.permute.xlu0 %378
    %v380 = vsel %vm142, %v377, 0
    %v382 = vsel %vm142, %v379, 0
    %384 = vmatpush.xpose.msra.mxu0 0.0
    %385 = vmatpush.xpose.msra.mxu0 0.0
    %386 = vmatpush.xpose.msra.mxu0 0.0
    %387 = vmatpush.xpose.msra.mxu0 0.0
    %388 = vmatpush.xpose.msra.mxu0 0.0
    %389 = vmatpush.xpose.msra.mxu0 0.0
    %390 = vmatpush.xpose.msra.mxu0 0.0
    %391 = vmatpush.xpose.msra.mxu0 0.0
    %392 = vmatpush.xpose.msra.mxu0 0.0
    %393 = vmatpush.xpose.msra.mxu0 0.0
    %394 = vmatpush.xpose.msra.mxu0 0.0
    %395 = vmatpush.xpose.msra.mxu0 0.0
    %396 = vmatpush.xpose.msra.mxu0 0.0
    %397 = vmatpush.xpose.msra.mxu0 0.0
    %398 = vmatpush.xpose.msra.mxu0 0.0
    %399 = vmatpush.xpose.msra.mxu0 %v382
    %400 = vmatmul.f32.gmra.mxu0 %v380
    %v401 = vpop.f32.mrf.mxu0
    %v402 = vadd.f32 0.0, %v401
    %403 = vdwg.mxu0
    %v404 = vmul.f32 %v402, 0.35355338
    %v405 = vsel %vm142, %v404, -inf
    %406 = vmax.xlane.f32.xlu0 %v405
    %v407 = vpop.xlane.xlu0 %406
    %v408 = vsub.f32 %v404, %v407
    %v409 = vmul.f32 %v408, 1.442695
    %v410 = vpow.pop %v409
    %v411 = vsel %vm142, %v410, 0.0
    %412 = vadd.xlane.f32.xlu0 %v411
    %v413 = vpop.xlane.xlu0 %412
    %v414 = vrcp.pop %v413
    %v415 = vmul.f32 %v413, %v414
    %v416 = vsub.f32 1.0, %v415
    %v417 = vmul.f32 %v414, %v416
    %v418 = vadd.f32 %v414, %v417
    %vm419 = vweird.f32 %v413
    %vm420 = vweird.f32 %v414
    %vm421 = vmor %vm419, %vm420
    %v422 = vsel %vm421, %v414, %v418
    %v423 = vand.u32 2147483647, %v413
    %vm424 = vcmp.eq.f32.partialorder %v423, 8.507059e+37
    %v425 = vand.u32 %v413, 2147483648
    %v426 = vor.u32 1.1754944e-38, %v425
    %v427 = vsel %vm424, %v426, %v422
    %v428 = vmul.f32 %v410, %v427
    %429 = vrot.lane.b32.xlu0 %v134, 40
    %v430 = vpop.permute.xlu0 %429
    %v433 = vsel %vm142, %v428, 0
    %435 = vmatpush.msra.mxu0 0.0
    %436 = vmatpush.msra.mxu0 0.0
    %437 = vmatpush.msra.mxu0 0.0
    %438 = vmatpush.msra.mxu0 0.0
    %439 = vmatpush.msra.mxu0 0.0
    %440 = vmatpush.msra.mxu0 0.0
    %441 = vmatpush.msra.mxu0 0.0
    %442 = vmatpush.msra.mxu0 0.0
    %443 = vmatpush.msra.mxu0 0.0
    %444 = vmatpush.msra.mxu0 0.0
    %445 = vmatpush.msra.mxu0 0.0
    %446 = vmatpush.msra.mxu0 0.0
    %447 = vmatpush.msra.mxu0 0.0
    %448 = vmatpush.msra.mxu0 0.0
    %449 = vmatpush.msra.mxu0 0.0
    %450 = vmatpush.msra.mxu0 %v430
    %451 = vmatmul.f32.gmra.mxu0 %v433
    %v452 = vpop.f32.mrf.mxu0
    %v453 = vadd.f32 0.0, %v452
    %454 = vdwg.mxu0
    %456 = vrot.lane.b32.xlu0 %v295, 8
    %v457 = vpop.permute.xlu0 %456
    %460 = vrot.lane.b32.xlu0 %v374, 16
    %v461 = vpop.permute.xlu0 %460
    %464 = vrot.lane.b32.xlu0 %v453, 24
    %v465 = vpop.permute.xlu0 %464
    %v467 = vsel %vm142, %v216, %v457
    %vm468 = vcmask 130048
    %v469 = vsel %vm468, %v467, %v461
    %vm470 = vcmask 195584
    %v471 = vsel %vm470, %v469, %v465
    %472 = vrot.lane.b32.xlu0 %v270, 8
    %v473 = vpop.permute.xlu0 %472
    %475 = vrot.lane.b32.xlu0 %v349, 16
    %v476 = vpop.permute.xlu0 %475
    %478 = vrot.lane.b32.xlu0 %v428, 24
    %v479 = vpop.permute.xlu0 %478
    %v481 = vsel %vm142, %v191, %v473
    %v482 = vsel %vm468, %v481, %v476
    %v483 = vsel %vm470, %v482, %v479
    %485 = vrot.lane.b32.xlu0 %v137, 96
    %v486 = vpop.permute.xlu0 %485
    %v487 = vsel %vm142, %v137, 0
    %v489 = vsel %vm142, %v486, 0
    %491 = vmatpush.xpose.msra.mxu0 0.0
    %492 = vmatpush.xpose.msra.mxu0 0.0
    %493 = vmatpush.xpose.msra.mxu0 0.0
    %494 = vmatpush.xpose.msra.mxu0 0.0
    %495 = vmatpush.xpose.msra.mxu0 0.0
    %496 = vmatpush.xpose.msra.mxu0 0.0
    %497 = vmatpush.xpose.msra.mxu0 0.0
    %498 = vmatpush.xpose.msra.mxu0 0.0
    %499 = vmatpush.xpose.msra.mxu0 0.0
    %500 = vmatpush.xpose.msra.mxu0 0.0
    %501 = vmatpush.xpose.msra.mxu0 0.0
    %502 = vmatpush.xpose.msra.mxu0 0.0
    %503 = vmatpush.xpose.msra.mxu0 0.0
    %504 = vmatpush.xpose.msra.mxu0 0.0
    %505 = vmatpush.xpose.msra.mxu0 0.0
    %506 = vmatpush.xpose.msra.mxu0 %v489
    %507 = vmatmul.f32.gmra.mxu0 %v487
    %v508 = vpop.f32.mrf.mxu0
    %v509 = vadd.f32 0.0, %v508
    %510 = vdwg.mxu0
    %v511 = vmul.f32 %v509, 0.35355338
    %v512 = vsel %vm142, %v511, -inf
    %513 = vmax.xlane.f32.xlu0 %v512
    %v514 = vpop.xlane.xlu0 %513
    %v515 = vsub.f32 %v511, %v514
    %v516 = vmul.f32 %v515, 1.442695
    %v517 = vpow.pop %v516
    %v518 = vsel %vm142, %v517, 0.0
    %519 = vadd.xlane.f32.xlu0 %v518
    %v520 = vpop.xlane.xlu0 %519
    %v521 = vrcp.pop %v520
    %v522 = vmul.f32 %v520, %v521
    %v523 = vsub.f32 1.0, %v522
    %v524 = vmul.f32 %v521, %v523
    %v525 = vadd.f32 %v521, %v524
    %vm526 = vweird.f32 %v520
    %vm527 = vweird.f32 %v521
    %vm528 = vmor %vm526, %vm527
    %v529 = vsel %vm528, %v521, %v525
    %v530 = vand.u32 2147483647, %v520
    %vm531 = vcmp.eq.f32.partialorder %v530, 8.507059e+37
    %v532 = vand.u32 %v520, 2147483648
    %v533 = vor.u32 1.1754944e-38, %v532
    %v534 = vsel %vm531, %v533, %v529
    %v535 = vmul.f32 %v517, %v534
    %536 = vrot.lane.b32.xlu0 %v137, 64
    %v537 = vpop.permute.xlu0 %536
    %v540 = vsel %vm142, %v535, 0
    %542 = vmatpush.msra.mxu0 0.0
    %543 = vmatpush.msra.mxu0 0.0
    %544 = vmatpush.msra.mxu0 0.0
    %545 = vmatpush.msra.mxu0 0.0
    %546 = vmatpush.msra.mxu0 0.0
    %547 = vmatpush.msra.mxu0 0.0
    %548 = vmatpush.msra.mxu0 0.0
    %549 = vmatpush.msra.mxu0 0.0
    %550 = vmatpush.msra.mxu0 0.0
    %551 = vmatpush.msra.mxu0 0.0
    %552 = vmatpush.msra.mxu0 0.0
    %553 = vmatpush.msra.mxu0 0.0
    %554 = vmatpush.msra.mxu0 0.0
    %555 = vmatpush.msra.mxu0 0.0
    %556 = vmatpush.msra.mxu0 0.0
    %557 = vmatpush.msra.mxu0 %v537
    %558 = vmatmul.f32.gmra.mxu0 %v540
    %v559 = vpop.f32.mrf.mxu0
    %v560 = vadd.f32 0.0, %v559
    %561 = vdwg.mxu0
    %562 = vrot.lane.b32.xlu0 %v137, 120
    %v563 = vpop.permute.xlu0 %562
    %564 = vrot.lane.b32.xlu0 %v137, 88
    %v565 = vpop.permute.xlu0 %564
    %v566 = vsel %vm142, %v563, 0
    %v568 = vsel %vm142, %v565, 0
    %570 = vmatpush.xpose.msra.mxu0 0.0
    %571 = vmatpush.xpose.msra.mxu0 0.0
    %572 = vmatpush.xpose.msra.mxu0 0.0
    %573 = vmatpush.xpose.msra.mxu0 0.0
    %574 = vmatpush.xpose.msra.mxu0 0.0
    %575 = vmatpush.xpose.msra.mxu0 0.0
    %576 = vmatpush.xpose.msra.mxu0 0.0
    %577 = vmatpush.xpose.msra.mxu0 0.0
    %578 = vmatpush.xpose.msra.mxu0 0.0
    %579 = vmatpush.xpose.msra.mxu0 0.0
    %580 = vmatpush.xpose.msra.mxu0 0.0
    %581 = vmatpush.xpose.msra.mxu0 0.0
    %582 = vmatpush.xpose.msra.mxu0 0.0
    %583 = vmatpush.xpose.msra.mxu0 0.0
    %584 = vmatpush.xpose.msra.mxu0 0.0
    %585 = vmatpush.xpose.msra.mxu0 %v568
    %586 = vmatmul.f32.gmra.mxu0 %v566
    %v587 = vpop.f32.mrf.mxu0
    %v588 = vadd.f32 0.0, %v587
    %589 = vdwg.mxu0
    %v590 = vmul.f32 %v588, 0.35355338
    %v591 = vsel %vm142, %v590, -inf
    %592 = vmax.xlane.f32.xlu0 %v591
    %v593 = vpop.xlane.xlu0 %592
    %v594 = vsub.f32 %v590, %v593
    %v595 = vmul.f32 %v594, 1.442695
    %v596 = vpow.pop %v595
    %v597 = vsel %vm142, %v596, 0.0
    %598 = vadd.xlane.f32.xlu0 %v597
    %v599 = vpop.xlane.xlu0 %598
    %v600 = vrcp.pop %v599
    %v601 = vmul.f32 %v599, %v600
    %v602 = vsub.f32 1.0, %v601
    %v603 = vmul.f32 %v600, %v602
    %v604 = vadd.f32 %v600, %v603
    %vm605 = vweird.f32 %v599
    %vm606 = vweird.f32 %v600
    %vm607 = vmor %vm605, %vm606
    %v608 = vsel %vm607, %v600, %v604
    %v609 = vand.u32 2147483647, %v599
    %vm610 = vcmp.eq.f32.partialorder %v609, 8.507059e+37
    %v611 = vand.u32 %v599, 2147483648
    %v612 = vor.u32 1.1754944e-38, %v611
    %v613 = vsel %vm610, %v612, %v608
    %v614 = vmul.f32 %v596, %v613
    %615 = vrot.lane.b32.xlu0 %v137, 56
    %v616 = vpop.permute.xlu0 %615
    %v619 = vsel %vm142, %v614, 0
    %621 = vmatpush.msra.mxu0 0.0
    %622 = vmatpush.msra.mxu0 0.0
    %623 = vmatpush.msra.mxu0 0.0
    %624 = vmatpush.msra.mxu0 0.0
    %625 = vmatpush.msra.mxu0 0.0
    %626 = vmatpush.msra.mxu0 0.0
    %627 = vmatpush.msra.mxu0 0.0
    %628 = vmatpush.msra.mxu0 0.0
    %629 = vmatpush.msra.mxu0 0.0
    %630 = vmatpush.msra.mxu0 0.0
    %631 = vmatpush.msra.mxu0 0.0
    %632 = vmatpush.msra.mxu0 0.0
    %633 = vmatpush.msra.mxu0 0.0
    %634 = vmatpush.msra.mxu0 0.0
    %635 = vmatpush.msra.mxu0 0.0
    %636 = vmatpush.msra.mxu0 %v616
    %637 = vmatmul.f32.gmra.mxu0 %v619
    %v638 = vpop.f32.mrf.mxu0
    %v639 = vadd.f32 0.0, %v638
    %640 = vdwg.mxu0
    %641 = vrot.lane.b32.xlu0 %v137, 112
    %v642 = vpop.permute.xlu0 %641
    %643 = vrot.lane.b32.xlu0 %v137, 80
    %v644 = vpop.permute.xlu0 %643
    %v645 = vsel %vm142, %v642, 0
    %v647 = vsel %vm142, %v644, 0
    %649 = vmatpush.xpose.msra.mxu0 0.0
    %650 = vmatpush.xpose.msra.mxu0 0.0
    %651 = vmatpush.xpose.msra.mxu0 0.0
    %652 = vmatpush.xpose.msra.mxu0 0.0
    %653 = vmatpush.xpose.msra.mxu0 0.0
    %654 = vmatpush.xpose.msra.mxu0 0.0
    %655 = vmatpush.xpose.msra.mxu0 0.0
    %656 = vmatpush.xpose.msra.mxu0 0.0
    %657 = vmatpush.xpose.msra.mxu0 0.0
    %658 = vmatpush.xpose.msra.mxu0 0.0
    %659 = vmatpush.xpose.msra.mxu0 0.0
    %660 = vmatpush.xpose.msra.mxu0 0.0
    %661 = vmatpush.xpose.msra.mxu0 0.0
    %662 = vmatpush.xpose.msra.mxu0 0.0
    %663 = vmatpush.xpose.msra.mxu0 0.0
    %664 = vmatpush.xpose.msra.mxu0 %v647
    %665 = vmatmul.f32.gmra.mxu0 %v645
    %v666 = vpop.f32.mrf.mxu0
    %v667 = vadd.f32 0.0, %v666
    %668 = vdwg.mxu0
    %v669 = vmul.f32 %v667, 0.35355338
    %v670 = vsel %vm142, %v669, -inf
    %671 = vmax.xlane.f32.xlu0 %v670
    %v672 = vpop.xlane.xlu0 %671
    %v673 = vsub.f32 %v669, %v672
    %v674 = vmul.f32 %v673, 1.442695
    %v675 = vpow.pop %v674
    %v676 = vsel %vm142, %v675, 0.0
    %677 = vadd.xlane.f32.xlu0 %v676
    %v678 = vpop.xlane.xlu0 %677
    %v679 = vrcp.pop %v678
    %v680 = vmul.f32 %v678, %v679
    %v681 = vsub.f32 1.0, %v680
    %v682 = vmul.f32 %v679, %v681
    %v683 = vadd.f32 %v679, %v682
    %vm684 = vweird.f32 %v678
    %vm685 = vweird.f32 %v679
    %vm686 = vmor %vm684, %vm685
    %v687 = vsel %vm686, %v679, %v683
    %v688 = vand.u32 2147483647, %v678
    %vm689 = vcmp.eq.f32.partialorder %v688, 8.507059e+37
    %v690 = vand.u32 %v678, 2147483648
    %v691 = vor.u32 1.1754944e-38, %v690
    %v692 = vsel %vm689, %v691, %v687
    %v693 = vmul.f32 %v675, %v692
    %694 = vrot.lane.b32.xlu0 %v137, 48
    %v695 = vpop.permute.xlu0 %694
    %v698 = vsel %vm142, %v693, 0
    %700 = vmatpush.msra.mxu0 0.0
    %701 = vmatpush.msra.mxu0 0.0
    %702 = vmatpush.msra.mxu0 0.0
    %703 = vmatpush.msra.mxu0 0.0
    %704 = vmatpush.msra.mxu0 0.0
    %705 = vmatpush.msra.mxu0 0.0
    %706 = vmatpush.msra.mxu0 0.0
    %707 = vmatpush.msra.mxu0 0.0
    %708 = vmatpush.msra.mxu0 0.0
    %709 = vmatpush.msra.mxu0 0.0
    %710 = vmatpush.msra.mxu0 0.0
    %711 = vmatpush.msra.mxu0 0.0
    %712 = vmatpush.msra.mxu0 0.0
    %713 = vmatpush.msra.mxu0 0.0
    %714 = vmatpush.msra.mxu0 0.0
    %715 = vmatpush.msra.mxu0 %v695
    %716 = vmatmul.f32.gmra.mxu0 %v698
    %v717 = vpop.f32.mrf.mxu0
    %v718 = vadd.f32 0.0, %v717
    %719 = vdwg.mxu0
    %720 = vrot.lane.b32.xlu0 %v137, 104
    %v721 = vpop.permute.xlu0 %720
    %722 = vrot.lane.b32.xlu0 %v137, 72
    %v723 = vpop.permute.xlu0 %722
    %v724 = vsel %vm142, %v721, 0
    %v726 = vsel %vm142, %v723, 0
    %728 = vmatpush.xpose.msra.mxu0 0.0
    %729 = vmatpush.xpose.msra.mxu0 0.0
    %730 = vmatpush.xpose.msra.mxu0 0.0
    %731 = vmatpush.xpose.msra.mxu0 0.0
    %732 = vmatpush.xpose.msra.mxu0 0.0
    %733 = vmatpush.xpose.msra.mxu0 0.0
    %734 = vmatpush.xpose.msra.mxu0 0.0
    %735 = vmatpush.xpose.msra.mxu0 0.0
    %736 = vmatpush.xpose.msra.mxu0 0.0
    %737 = vmatpush.xpose.msra.mxu0 0.0
    %738 = vmatpush.xpose.msra.mxu0 0.0
    %739 = vmatpush.xpose.msra.mxu0 0.0
    %740 = vmatpush.xpose.msra.mxu0 0.0
    %741 = vmatpush.xpose.msra.mxu0 0.0
    %742 = vmatpush.xpose.msra.mxu0 0.0
    %743 = vmatpush.xpose.msra.mxu0 %v726
    %744 = vmatmul.f32.gmra.mxu0 %v724
    %v745 = vpop.f32.mrf.mxu0
    %v746 = vadd.f32 0.0, %v745
    %747 = vdwg.mxu0
    %v748 = vmul.f32 %v746, 0.35355338
    %v749 = vsel %vm142, %v748, -inf
    %750 = vmax.xlane.f32.xlu0 %v749
    %v751 = vpop.xlane.xlu0 %750
    %v752 = vsub.f32 %v748, %v751
    %v753 = vmul.f32 %v752, 1.442695
    %v754 = vpow.pop %v753
    %v755 = vsel %vm142, %v754, 0.0
    %756 = vadd.xlane.f32.xlu0 %v755
    %v757 = vpop.xlane.xlu0 %756
    %v758 = vrcp.pop %v757
    %v759 = vmul.f32 %v757, %v758
    %v760 = vsub.f32 1.0, %v759
    %v761 = vmul.f32 %v758, %v760
    %v762 = vadd.f32 %v758, %v761
    %vm763 = vweird.f32 %v757
    %vm764 = vweird.f32 %v758
    %vm765 = vmor %vm763, %vm764
    %v766 = vsel %vm765, %v758, %v762
    %v767 = vand.u32 2147483647, %v757
    %vm768 = vcmp.eq.f32.partialorder %v767, 8.507059e+37
    %v769 = vand.u32 %v757, 2147483648
    %v770 = vor.u32 1.1754944e-38, %v769
    %v771 = vsel %vm768, %v770, %v766
    %v772 = vmul.f32 %v754, %v771
    %773 = vrot.lane.b32.xlu0 %v137, 40
    %v774 = vpop.permute.xlu0 %773
    %v777 = vsel %vm142, %v772, 0
    %779 = vmatpush.msra.mxu0 0.0
    %780 = vmatpush.msra.mxu0 0.0
    %781 = vmatpush.msra.mxu0 0.0
    %782 = vmatpush.msra.mxu0 0.0
    %783 = vmatpush.msra.mxu0 0.0
    %784 = vmatpush.msra.mxu0 0.0
    %785 = vmatpush.msra.mxu0 0.0
    %786 = vmatpush.msra.mxu0 0.0
    %787 = vmatpush.msra.mxu0 0.0
    %788 = vmatpush.msra.mxu0 0.0
    %789 = vmatpush.msra.mxu0 0.0
    %790 = vmatpush.msra.mxu0 0.0
    %791 = vmatpush.msra.mxu0 0.0
    %792 = vmatpush.msra.mxu0 0.0
    %793 = vmatpush.msra.mxu0 0.0
    %794 = vmatpush.msra.mxu0 %v774
    %795 = vmatmul.f32.gmra.mxu0 %v777
    %v796 = vpop.f32.mrf.mxu0
    %v797 = vadd.f32 0.0, %v796
    %798 = vdwg.mxu0
    %800 = vrot.lane.b32.xlu0 %v639, 8
    %v801 = vpop.permute.xlu0 %800
    %804 = vrot.lane.b32.xlu0 %v718, 16
    %v805 = vpop.permute.xlu0 %804
    %808 = vrot.lane.b32.xlu0 %v797, 24
    %v809 = vpop.permute.xlu0 %808
    %v811 = vsel %vm142, %v560, %v801
    %v812 = vsel %vm468, %v811, %v805
    %v813 = vsel %vm470, %v812, %v809
    %814 = vrot.lane.b32.xlu0 %v614, 8
    %v815 = vpop.permute.xlu0 %814
    %817 = vrot.lane.b32.xlu0 %v693, 16
    %v818 = vpop.permute.xlu0 %817
    %820 = vrot.lane.b32.xlu0 %v772, 24
    %v821 = vpop.permute.xlu0 %820
    %v823 = vsel %vm142, %v535, %v815
    %v824 = vsel %vm468, %v823, %v818
    %v825 = vsel %vm470, %v824, %v821
    %v826 = vperm.slane %v32, 4
    %835 = vrot.lane.b32.xlu0 %v20, 32
    %v836 = vpop.permute.xlu0 %835
    %837 = vrot.lane.b32.xlu0 %v21, 32
    %v838 = vpop.permute.xlu0 %837
    %839 = vrot.lane.b32.xlu0 %v23, 32
    %v840 = vpop.permute.xlu0 %839
    %841 = vrot.lane.b32.xlu0 %v24, 32
    %v842 = vpop.permute.xlu0 %841
    %843 = vrot.lane.b32.xlu0 %v26, 32
    %v844 = vpop.permute.xlu0 %843
    %845 = vrot.lane.b32.xlu0 %v27, 32
    %v846 = vpop.permute.xlu0 %845
    %847 = vrot.lane.b32.xlu0 %v29, 32
    %v848 = vpop.permute.xlu0 %847
    %849 = vrot.lane.b32.xlu0 %v30, 32
    %v850 = vpop.permute.xlu0 %849
    %v851 = vsel %vm52, %v836, %v838
    %v852 = vsel %vm52, %v840, %v842
    %v853 = vsel %vm52, %v844, %v846
    %v854 = vsel %vm52, %v848, %v850
    %v860 = vsel %vm52, %v471, 0
    %v863 = vsel %vm52, %v813, 0
    %865 = vmatpush.msra.mxu0 0.0
    %866 = vmatpush.msra.mxu0 0.0
    %867 = vmatpush.msra.mxu0 0.0
    %868 = vmatpush.msra.mxu0 0.0
    %869 = vmatpush.msra.mxu0 0.0
    %870 = vmatpush.msra.mxu0 0.0
    %871 = vmatpush.msra.mxu0 0.0
    %872 = vmatpush.msra.mxu0 0.0
    %873 = vmatpush.msra.mxu0 0.0
    %874 = vmatpush.msra.mxu0 0.0
    %875 = vmatpush.msra.mxu0 0.0
    %876 = vmatpush.msra.mxu0 0.0
    %877 = vmatpush.msra.mxu0 %v854
    %878 = vmatpush.msra.mxu0 %v853
    %879 = vmatpush.msra.mxu0 %v852
    %880 = vmatpush.msra.mxu0 %v851
    %881 = vmatmul.f32.gmra.mxu0 %v860
    %v882 = vpop.f32.mrf.mxu0
    %v883 = vadd.f32 %v826, %v882
    %884 = vmatmul.f32.gmra.mxu0 %v863
    %v885 = vpop.f32.mrf.mxu0
    %v886 = vadd.f32 %v826, %v885
    %887 = vdwg.mxu0
    %v888 = vmul.f32 %v883, 0.5
    %v889 = vmul.f32 %v886, 0.5
    %v890 = vmul.f32 %v883, 0.70710677
    %v891 = vmul.f32 %v886, 0.70710677
    %v892 = vand.u32 2147483647, %v890
    %v893 = vand.u32 2147483647, %v891
    %v894 = vmul.f32 %v892, 0.3275911
    %v895 = vmul.f32 %v893, 0.3275911
    %v896 = vadd.f32 %v894, 1.0
    %v897 = vadd.f32 %v895, 1.0
    %v898 = vrcp.pop %v896
    %v899 = vmul.f32 %v896, %v898
    %v900 = vsub.f32 1.0, %v899
    %v901 = vmul.f32 %v898, %v900
    %v902 = vadd.f32 %v898, %v901
    %vm903 = vweird.f32 %v896
    %vm904 = vweird.f32 %v898
    %vm905 = vmor %vm903, %vm904
    %v906 = vsel %vm905, %v898, %v902
    %v907 = vand.u32 2147483647, %v896
    %vm908 = vcmp.eq.f32.partialorder %v907, 8.507059e+37
    %v909 = vand.u32 %v896, 2147483648
    %v910 = vor.u32 1.1754944e-38, %v909
    %v911 = vsel %vm908, %v910, %v906
    %v912 = vmul.f32 1.0, %v911
    %v913 = vrcp.pop %v897
    %v914 = vmul.f32 %v897, %v913
    %v915 = vsub.f32 1.0, %v914
    %v916 = vmul.f32 %v913, %v915
    %v917 = vadd.f32 %v913, %v916
    %vm918 = vweird.f32 %v897
    %vm919 = vweird.f32 %v913
    %vm920 = vmor %vm918, %vm919
    %v921 = vsel %vm920, %v913, %v917
    %v922 = vand.u32 2147483647, %v897
    %vm923 = vcmp.eq.f32.partialorder %v922, 8.507059e+37
    %v924 = vand.u32 %v897, 2147483648
    %v925 = vor.u32 1.1754944e-38, %v924
    %v926 = vsel %vm923, %v925, %v921
    %v927 = vmul.f32 1.0, %v926
    %v928 = vmul.f32 %v912, 1.0614054
    %v929 = vmul.f32 %v927, 1.0614054
    %v930 = vadd.f32 %v928, -1.4531521
    %v931 = vadd.f32 %v929, -1.4531521
    %v932 = vmul.f32 %v930, %v912
    %v933 = vmul.f32 %v931, %v927
    %v934 = vadd.f32 %v932, 1.4214138
    %v935 = vadd.f32 %v933, 1.4214138
    %v936 = vmul.f32 %v934, %v912
    %v937 = vmul.f32 %v935, %v927
    %v938 = vadd.f32 %v936, -0.28449672
    %v939 = vadd.f32 %v937, -0.28449672
    %v940 = vmul.f32 %v938, %v912
    %v941 = vmul.f32 %v939, %v927
    %v942 = vadd.f32 %v940, 0.2548296
    %v943 = vadd.f32 %v941, 0.2548296
    %v944 = vmul.f32 %v942, %v912
    %v945 = vmul.f32 %v943, %v927
    %v946 = vsub.f32 0.0, %v892
    %v947 = vsub.f32 0.0, %v893
    %v948 = vmul.f32 %v946, %v892
    %v949 = vmul.f32 %v947, %v893
    %v950 = vmul.f32 %v948, 1.442695
    %v951 = vpow.pop %v950
    %v952 = vmul.f32 %v949, 1.442695
    %v953 = vpow.pop %v952
    %v954 = vmul.f32 %v944, %v951
    %v955 = vmul.f32 %v945, %v953
    %v956 = vsub.f32 1.0, %v954
    %v957 = vsub.f32 1.0, %v955
    %vm958 = vcmp.ge.f32.partialorder %v890, 0.0
    %vm959 = vcmp.ge.f32.partialorder %v891, 0.0
    %v960 = vsub.f32 0.0, %v956
    %v961 = vsub.f32 0.0, %v957
    %v962 = vsel %vm958, %v956, %v960
    %v963 = vsel %vm959, %v957, %v961
    %v964 = vadd.f32 %v962, 1.0
    %v965 = vadd.f32 %v963, 1.0
    %v966 = vmul.f32 %v888, %v964
    %v967 = vmul.f32 %v889, %v965
    %970 = vrot.lane.b32.xlu0 %v966, 96
    %v971 = vpop.permute.xlu0 %970
    %972 = vrot.lane.b32.xlu0 %v967, 96
    %v973 = vpop.permute.xlu0 %972
    %v974 = vsel %vm142, %v971, 0
    %v976 = vsel %vm142, %v973, 0
    %978 = vmatpush.msra.mxu0 0.0
    %979 = vmatpush.msra.mxu0 0.0
    %980 = vmatpush.msra.mxu0 0.0
    %981 = vmatpush.msra.mxu0 0.0
    %982 = vmatpush.msra.mxu0 0.0
    %983 = vmatpush.msra.mxu0 0.0
    %984 = vmatpush.msra.mxu0 0.0
    %985 = vmatpush.msra.mxu0 0.0
    %986 = vmatpush.msra.mxu0 0.0
    %987 = vmatpush.msra.mxu0 0.0
    %988 = vmatpush.msra.mxu0 0.0
    %989 = vmatpush.msra.mxu0 0.0
    %990 = vmatpush.msra.mxu0 0.0
    %991 = vmatpush.msra.mxu0 0.0
    %992 = vmatpush.msra.mxu0 0.0
    %993 = vmatpush.msra.mxu0 %v51
    %994 = vmatmul.f32.gmra.mxu0 %v974
    %v995 = vpop.f32.mrf.mxu0
    %v996 = vadd.f32 0.0, %v995
    %997 = vmatmul.f32.gmra.mxu0 %v976
    %v998 = vpop.f32.mrf.mxu0
    %v999 = vadd.f32 0.0, %v998
    %1000 = vdwg.mxu0
    %v1001 = vadd.f32 %v883, %v996
    %v1002 = vadd.f32 %v886, %v999
    %v1003 = vperm.slane %v32, 5
    %v1004 = vadd.f32 %v1001, %v1003
    %v1005 = vadd.f32 %v1002, %v1003
    %v1006 = vadd.f32 %v18, %v1004
    %v1007 = vadd.f32 %v19, %v1005
    %v1008 = vsel %vm52, %v1006, 0.0
    %1009 = vadd.xlane.f32.xlu0 %v1008
    %v1010 = vpop.xlane.xlu0 %1009
    %v1011 = vsel %vm52, %v1007, 0.0
    %1012 = vadd.xlane.f32.xlu0 %v1011
    %v1013 = vpop.xlane.xlu0 %1012
    %v1014 = vmul.f32 %v1010, %v65
    %v1015 = vmul.f32 %v1013, %v65
    %v1016 = vsub.f32 %v1006, %v1014
    %v1017 = vsub.f32 %v1007, %v1015
    %v1018 = vmul.f32 %v1016, %v1016
    %v1019 = vmul.f32 %v1017, %v1017
    %v1020 = vsel %vm52, %v1018, 0.0
    %1021 = vadd.xlane.f32.xlu0 %v1020
    %v1022 = vpop.xlane.xlu0 %1021
    %v1023 = vsel %vm52, %v1019, 0.0
    %1024 = vadd.xlane.f32.xlu0 %v1023
    %v1025 = vpop.xlane.xlu0 %1024
    %v1026 = vmul.f32 %v1022, %v65
    %v1027 = vmul.f32 %v1025, %v65
    %v1028 = vadd.f32 %v1026, 1e-05
    %v1029 = vadd.f32 %v1027, 1e-05
    %v1030 = vrsqrt.pop %v1028
    %v1031 = vmul.f32 %v1030, %v1028
    %v1032 = vmul.f32 %v1031, %v1030
    %v1033 = vmul.f32 0.5, %v1032
    %v1034 = vsub.f32 1.5, %v1033
    %v1035 = vmul.f32 %v1030, %v1034
    %vm1036 = vweird.f32 %v1028
    %vm1037 = vweird.f32 %v1030
    %vm1038 = vmor %vm1036, %vm1037
    %v1039 = vsel %vm1038, %v1030, %v1035
    %v1040 = vrsqrt.pop %v1029
    %v1041 = vmul.f32 %v1040, %v1029
    %v1042 = vmul.f32 %v1041, %v1040
    %v1043 = vmul.f32 0.5, %v1042
    %v1044 = vsub.f32 1.5, %v1043
    %v1045 = vmul.f32 %v1040, %v1044
    %vm1046 = vweird.f32 %v1029
    %vm1047 = vweird.f32 %v1040
    %vm1048 = vmor %vm1046, %vm1047
    %v1049 = vsel %vm1048, %v1040, %v1045
    %v1050 = vmul.f32 %v1016, %v1039
    %v1051 = vmul.f32 %v1017, %v1049
    %v1052 = vperm.slane %v32, 2
    %v1053 = vmul.f32 %v1050, %v1052
    %v1054 = vmul.f32 %v1051, %v1052
    %v1055 = vperm.slane %v32, 3
    %v1056 = vadd.f32 %v1053, %v1055
    %v1057 = vadd.f32 %v1054, %v1055
    %v1058 = vperm.slane %v32, 6
    %v1059 = vperm.slane %v33, 6
    %1064 = vrot.lane.b32.xlu0 %v21, 120
    %v1065 = vpop.permute.xlu0 %1064
    %1066 = vrot.lane.b32.xlu0 %v22, 120
    %v1067 = vpop.permute.xlu0 %1066
    %1068 = vrot.lane.b32.xlu0 %v24, 120
    %v1069 = vpop.permute.xlu0 %1068
    %1070 = vrot.lane.b32.xlu0 %v25, 120
    %v1071 = vpop.permute.xlu0 %1070
    %1072 = vrot.lane.b32.xlu0 %v27, 120
    %v1073 = vpop.permute.xlu0 %1072
    %1074 = vrot.lane.b32.xlu0 %v28, 120
    %v1075 = vpop.permute.xlu0 %1074
    %1076 = vrot.lane.b32.xlu0 %v30, 120
    %v1077 = vpop.permute.xlu0 %1076
    %1078 = vrot.lane.b32.xlu0 %v31, 120
    %v1079 = vpop.permute.xlu0 %1078
    %vm1080 = vcmask 982016
    %v1081 = vsel %vm1080, %v1065, %v1067
    %v1082 = vsel %vm1080, %v1069, %v1071
    %v1083 = vsel %vm1080, %v1073, %v1075
    %v1084 = vsel %vm1080, %v1077, %v1079
    %v1094 = vsel %vm52, %v1056, 0
    %v1097 = vsel %vm52, %v1057, 0
    %1099 = vmatpush.msra.mxu0 0.0
    %1100 = vmatpush.msra.mxu0 0.0
    %1101 = vmatpush.msra.mxu0 0.0
    %1102 = vmatpush.msra.mxu0 0.0
    %1103 = vmatpush.msra.mxu0 0.0
    %1104 = vmatpush.msra.mxu0 0.0
    %1105 = vmatpush.msra.mxu0 0.0
    %1106 = vmatpush.msra.mxu0 0.0
    %1107 = vmatpush.msra.mxu0 0.0
    %1108 = vmatpush.msra.mxu0 0.0
    %1109 = vmatpush.msra.mxu0 0.0
    %1110 = vmatpush.msra.mxu0 0.0
    %1111 = vmatpush.msra.mxu0 %v1084
    %1112 = vmatpush.msra.mxu0 %v1083
    %1113 = vmatpush.msra.mxu0 %v1082
    %1114 = vmatpush.msra.mxu0 %v1081
    %1115 = vmatmul.f32.gmra.mxu0 %v1094
    %v1116 = vpop.f32.mrf.mxu0
    %v1117 = vadd.f32 %v1058, %v1116
    %1118 = vmatmul.f32.gmra.mxu0 %v1097
    %v1119 = vpop.f32.mrf.mxu0
    %v1120 = vadd.f32 %v1058, %v1119
    %1121 = vdwg.mxu0
    %1122 = vmatpush.msra.mxu0 0.0
    %1123 = vmatpush.msra.mxu0 0.0
    %1124 = vmatpush.msra.mxu0 0.0
    %1125 = vmatpush.msra.mxu0 0.0
    %1126 = vmatpush.msra.mxu0 0.0
    %1127 = vmatpush.msra.mxu0 0.0
    %1128 = vmatpush.msra.mxu0 0.0
    %1129 = vmatpush.msra.mxu0 0.0
    %1130 = vmatpush.msra.mxu0 0.0
    %1131 = vmatpush.msra.mxu0 0.0
    %1132 = vmatpush.msra.mxu0 0.0
    %1133 = vmatpush.msra.mxu0 0.0
    %1134 = vmatpush.msra.mxu0 %v1079
    %1135 = vmatpush.msra.mxu0 %v1075
    %1136 = vmatpush.msra.mxu0 %v1071
    %1137 = vmatpush.msra.mxu0 %v1067
    %1138 = vmatmul.f32.gmra.mxu0 %v1094
    %v1139 = vpop.f32.mrf.mxu0
    %v1140 = vadd.f32 %v1059, %v1139
    %1141 = vmatmul.f32.gmra.mxu0 %v1097
    %v1142 = vpop.f32.mrf.mxu0
    %v1143 = vadd.f32 %v1059, %v1142
    %1144 = vdwg.mxu0
    %v1145 = vmul.f32 %v1117, 0.5
    %v1146 = vmul.f32 %v1140, 0.5
    %v1147 = vmul.f32 %v1120, 0.5
    %v1148 = vmul.f32 %v1143, 0.5
    %v1149 = vmul.f32 %v1117, 0.70710677
    %v1150 = vmul.f32 %v1140, 0.70710677
    %v1151 = vmul.f32 %v1120, 0.70710677
    %v1152 = vmul.f32 %v1143, 0.70710677
    %v1153 = vand.u32 2147483647, %v1149
    %v1154 = vand.u32 2147483647, %v1150
    %v1155 = vand.u32 2147483647, %v1151
    %v1156 = vand.u32 2147483647, %v1152
    %v1157 = vmul.f32 %v1153, 0.3275911
    %v1158 = vmul.f32 %v1154, 0.3275911
    %v1159 = vmul.f32 %v1155, 0.3275911
    %v1160 = vmul.f32 %v1156, 0.3275911
    %v1161 = vadd.f32 %v1157, 1.0
    %v1162 = vadd.f32 %v1158, 1.0
    %v1163 = vadd.f32 %v1159, 1.0
    %v1164 = vadd.f32 %v1160, 1.0
    %v1165 = vrcp.pop %v1161
    %v1166 = vmul.f32 %v1161, %v1165
    %v1167 = vsub.f32 1.0, %v1166
    %v1168 = vmul.f32 %v1165, %v1167
    %v1169 = vadd.f32 %v1165, %v1168
    %vm1170 = vweird.f32 %v1161
    %vm1171 = vweird.f32 %v1165
    %vm1172 = vmor %vm1170, %vm1171
    %v1173 = vsel %vm1172, %v1165, %v1169
    %v1174 = vand.u32 2147483647, %v1161
    %vm1175 = vcmp.eq.f32.partialorder %v1174, 8.507059e+37
    %v1176 = vand.u32 %v1161, 2147483648
    %v1177 = vor.u32 1.1754944e-38, %v1176
    %v1178 = vsel %vm1175, %v1177, %v1173
    %v1179 = vmul.f32 1.0, %v1178
    %v1180 = vrcp.pop %v1162
    %v1181 = vmul.f32 %v1162, %v1180
    %v1182 = vsub.f32 1.0, %v1181
    %v1183 = vmul.f32 %v1180, %v1182
    %v1184 = vadd.f32 %v1180, %v1183
    %vm1185 = vweird.f32 %v1162
    %vm1186 = vweird.f32 %v1180
    %vm1187 = vmor %vm1185, %vm1186
    %v1188 = vsel %vm1187, %v1180, %v1184
    %v1189 = vand.u32 2147483647, %v1162
    %vm1190 = vcmp.eq.f32.partialorder %v1189, 8.507059e+37
    %v1191 = vand.u32 %v1162, 2147483648
    %v1192 = vor.u32 1.1754944e-38, %v1191
    %v1193 = vsel %vm1190, %v1192, %v1188
    %v1194 = vmul.f32 1.0, %v1193
    %v1195 = vrcp.pop %v1163
    %v1196 = vmul.f32 %v1163, %v1195
    %v1197 = vsub.f32 1.0, %v1196
    %v1198 = vmul.f32 %v1195, %v1197
    %v1199 = vadd.f32 %v1195, %v1198
    %vm1200 = vweird.f32 %v1163
    %vm1201 = vweird.f32 %v1195
    %vm1202 = vmor %vm1200, %vm1201
    %v1203 = vsel %vm1202, %v1195, %v1199
    %v1204 = vand.u32 2147483647, %v1163
    %vm1205 = vcmp.eq.f32.partialorder %v1204, 8.507059e+37
    %v1206 = vand.u32 %v1163, 2147483648
    %v1207 = vor.u32 1.1754944e-38, %v1206
    %v1208 = vsel %vm1205, %v1207, %v1203
    %v1209 = vmul.f32 1.0, %v1208
    %v1210 = vrcp.pop %v1164
    %v1211 = vmul.f32 %v1164, %v1210
    %v1212 = vsub.f32 1.0, %v1211
    %v1213 = vmul.f32 %v1210, %v1212
    %v1214 = vadd.f32 %v1210, %v1213
    %vm1215 = vweird.f32 %v1164
    %vm1216 = vweird.f32 %v1210
    %vm1217 = vmor %vm1215, %vm1216
    %v1218 = vsel %vm1217, %v1210, %v1214
    %v1219 = vand.u32 2147483647, %v1164
    %vm1220 = vcmp.eq.f32.partialorder %v1219, 8.507059e+37
    %v1221 = vand.u32 %v1164, 2147483648
    %v1222 = vor.u32 1.1754944e-38, %v1221
    %v1223 = vsel %vm1220, %v1222, %v1218
    %v1224 = vmul.f32 1.0, %v1223
    %v1225 = vmul.f32 %v1179, 1.0614054
    %v1226 = vmul.f32 %v1194, 1.0614054
    %v1227 = vmul.f32 %v1209, 1.0614054
    %v1228 = vmul.f32 %v1224, 1.0614054
    %v1229 = vadd.f32 %v1225, -1.4531521
    %v1230 = vadd.f32 %v1226, -1.4531521
    %v1231 = vadd.f32 %v1227, -1.4531521
    %v1232 = vadd.f32 %v1228, -1.4531521
    %v1233 = vmul.f32 %v1229, %v1179
    %v1234 = vmul.f32 %v1230, %v1194
    %v1235 = vmul.f32 %v1231, %v1209
    %v1236 = vmul.f32 %v1232, %v1224
    %v1237 = vadd.f32 %v1233, 1.4214138
    %v1238 = vadd.f32 %v1234, 1.4214138
    %v1239 = vadd.f32 %v1235, 1.4214138
    %v1240 = vadd.f32 %v1236, 1.4214138
    %v1241 = vmul.f32 %v1237, %v1179
    %v1242 = vmul.f32 %v1238, %v1194
    %v1243 = vmul.f32 %v1239, %v1209
    %v1244 = vmul.f32 %v1240, %v1224
    %v1245 = vadd.f32 %v1241, -0.28449672
    %v1246 = vadd.f32 %v1242, -0.28449672
    %v1247 = vadd.f32 %v1243, -0.28449672
    %v1248 = vadd.f32 %v1244, -0.28449672
    %v1249 = vmul.f32 %v1245, %v1179
    %v1250 = vmul.f32 %v1246, %v1194
    %v1251 = vmul.f32 %v1247, %v1209
    %v1252 = vmul.f32 %v1248, %v1224
    %v1253 = vadd.f32 %v1249, 0.2548296
    %v1254 = vadd.f32 %v1250, 0.2548296
    %v1255 = vadd.f32 %v1251, 0.2548296
    %v1256 = vadd.f32 %v1252, 0.2548296
    %v1257 = vmul.f32 %v1253, %v1179
    %v1258 = vmul.f32 %v1254, %v1194
    %v1259 = vmul.f32 %v1255, %v1209
    %v1260 = vmul.f32 %v1256, %v1224
    %v1261 = vsub.f32 0.0, %v1153
    %v1262 = vsub.f32 0.0, %v1154
    %v1263 = vsub.f32 0.0, %v1155
    %v1264 = vsub.f32 0.0, %v1156
    %v1265 = vmul.f32 %v1261, %v1153
    %v1266 = vmul.f32 %v1262, %v1154
    %v1267 = vmul.f32 %v1263, %v1155
    %v1268 = vmul.f32 %v1264, %v1156
    %v1269 = vmul.f32 %v1265, 1.442695
    %v1270 = vpow.pop %v1269
    %v1271 = vmul.f32 %v1266, 1.442695
    %v1272 = vpow.pop %v1271
    %v1273 = vmul.f32 %v1267, 1.442695
    %v1274 = vpow.pop %v1273
    %v1275 = vmul.f32 %v1268, 1.442695
    %v1276 = vpow.pop %v1275
    %v1277 = vmul.f32 %v1257, %v1270
    %v1278 = vmul.f32 %v1258, %v1272
    %v1279 = vmul.f32 %v1259, %v1274
    %v1280 = vmul.f32 %v1260, %v1276
    %v1281 = vsub.f32 1.0, %v1277
    %v1282 = vsub.f32 1.0, %v1278
    %v1283 = vsub.f32 1.0, %v1279
    %v1284 = vsub.f32 1.0, %v1280
    %vm1285 = vcmp.ge.f32.partialorder %v1149, 0.0
    %vm1286 = vcmp.ge.f32.partialorder %v1150, 0.0
    %vm1287 = vcmp.ge.f32.partialorder %v1151, 0.0
    %vm1288 = vcmp.ge.f32.partialorder %v1152, 0.0
    %v1289 = vsub.f32 0.0, %v1281
    %v1290 = vsub.f32 0.0, %v1282
    %v1291 = vsub.f32 0.0, %v1283
    %v1292 = vsub.f32 0.0, %v1284
    %v1293 = vsel %vm1285, %v1281, %v1289
    %v1294 = vsel %vm1286, %v1282, %v1290
    %v1295 = vsel %vm1287, %v1283, %v1291
    %v1296 = vsel %vm1288, %v1284, %v1292
    %v1297 = vadd.f32 %v1293, 1.0
    %v1298 = vadd.f32 %v1294, 1.0
    %v1299 = vadd.f32 %v1295, 1.0
    %v1300 = vadd.f32 %v1296, 1.0
    %v1301 = vmul.f32 %v1145, %v1297
    %v1302 = vmul.f32 %v1146, %v1298
    %v1303 = vmul.f32 %v1147, %v1299
    %v1304 = vmul.f32 %v1148, %v1300
    %v1306 = vsel %vm142, %v1302, 0
    %v1309 = vsel %vm142, %v1304, 0
    %1311 = vmatpush.msra.mxu0 %v49
    %1312 = vmatpush.msra.mxu0 %v48
    %1313 = vmatpush.msra.mxu0 %v47
    %1314 = vmatpush.msra.mxu0 %v46
    %1315 = vmatpush.msra.mxu0 %v45
    %1316 = vmatpush.msra.mxu0 %v44
    %1317 = vmatpush.msra.mxu0 %v43
    %1318 = vmatpush.msra.mxu0 %v42
    %1319 = vmatpush.msra.mxu0 %v41
    %1320 = vmatpush.msra.mxu0 %v40
    %1321 = vmatpush.msra.mxu0 %v39
    %1322 = vmatpush.msra.mxu0 %v38
    %1323 = vmatpush.msra.mxu0 %v37
    %1324 = vmatpush.msra.mxu0 %v36
    %1325 = vmatpush.msra.mxu0 %v35
    %1326 = vmatpush.msra.mxu0 %v34
    %1327 = vmatmul.f32.gmra.mxu0 %v1301
    %v1328 = vpop.f32.mrf.mxu0
    %v1329 = vadd.f32 0.0, %v1328
    %1330 = vmatmul.f32.gmra.mxu0 %v1303
    %v1331 = vpop.f32.mrf.mxu0
    %v1332 = vadd.f32 0.0, %v1331
    %1333 = vdwg.mxu0
    %1334 = vmatpush.msra.mxu0 0.0
    %1335 = vmatpush.msra.mxu0 0.0
    %1336 = vmatpush.msra.mxu0 0.0
    %1337 = vmatpush.msra.mxu0 0.0
    %1338 = vmatpush.msra.mxu0 0.0
    %1339 = vmatpush.msra.mxu0 0.0
    %1340 = vmatpush.msra.mxu0 0.0
    %1341 = vmatpush.msra.mxu0 0.0
    %1342 = vmatpush.msra.mxu0 0.0
    %1343 = vmatpush.msra.mxu0 0.0
    %1344 = vmatpush.msra.mxu0 0.0
    %1345 = vmatpush.msra.mxu0 0.0
    %1346 = vmatpush.msra.mxu0 0.0
    %1347 = vmatpush.msra.mxu0 0.0
    %1348 = vmatpush.msra.mxu0 0.0
    %1349 = vmatpush.msra.mxu0 %v50
    %1350 = vmatmul.f32.gmra.mxu0 %v1306
    %v1351 = vpop.f32.mrf.mxu0
    %v1352 = vadd.f32 %v1329, %v1351
    %1353 = vmatmul.f32.gmra.mxu0 %v1309
    %v1354 = vpop.f32.mrf.mxu0
    %v1355 = vadd.f32 %v1332, %v1354
    %1356 = vdwg.mxu0
    %v1357 = vadd.f32 %v1006, %v1352
    %v1358 = vadd.f32 %v1007, %v1355
    %v1359 = vperm.slane %v32, 7
    %v1360 = vadd.f32 %v1357, %v1359
    %v1361 = vadd.f32 %v1358, %v1359
    %1364 = vrot.lane.b32.xlu0 %v483, 32
    %v1365 = vpop.permute.xlu0 %1364
    %1366 = vrot.lane.b32.xlu0 %v825, 32
    %v1367 = vpop.permute.xlu0 %1366
    %v1370 = vsel %vm52, %v1360, %v1365
    %v1371 = vsel %vm52, %v1361, %v1367
    %vm1372 = vcmask 523264
    %v1373 = vsel %vm1372, %v1370, 0.0
    %v1374 = vsel %vm1372, %v1371, 0.0
    %1375 = vst [vmem:[#allocation2] sm:$0xff] %v1373
    %1376 = vst [vmem:[#allocation2 + $0x8] sm:$0xff] %v1374
    // Predicated region
    $region18: #{tpu_custom_call.1} parent=1 // pred_check
      _
    $region19: #{tpu_custom_call.1} parent=1 // pred_check_branch
      %1378 = sbr.rel (0) target = $region21
    $region20: #{tpu_custom_call.1} parent=1 // pred_region
      %1380 = vsyncadd [#allocation3], 0
      %s1381 = sshll.u32 [#allocation2], 4
      %s1382 = int_to_ptr.vmem [resolvable:$true] %s1381
      %s1383 = sshll.u32 %s4, 4
      %s1384 = int_to_ptr.hbm [resolvable:$true] %s1383
      %1389 = dma.vmem_to_hbm [thread:$0]  %s1382, 256, %s1384, [#allocation3], 128, 128, 8
    $region21: #{tpu_custom_call.1} parent=1 // pred_fallthru
      _
    // Predicated region
    $region22: #{tpu_custom_call.1} parent=1 // pred_check
      _
    $region23: #{tpu_custom_call.1} parent=1 // pred_check_branch
      %1391 = sbr.rel (0) target = $region25
    $region24: #{tpu_custom_call.1} parent=1 // pred_region
      %1393 = dma.done [#allocation3], 256
    $region25: #{tpu_custom_call.1} parent=1 // pred_fallthru
      _
    %1394 = vsyncpa [#allocation3], 1

</llo_original>
